<compile_context>
chip_gen: v5e
topology: v5e:2x2
jax: 0.10.0
libtpu: 0.0.40
codegen_flags: <defaults>
</compile_context>

<pallas_src>
import numpy as np
import jax
import jax.numpy as jnp
from jax.experimental import pallas as pl
from jax.experimental.pallas import tpu as pltpu


# ----------------------------------------------------------------------------- helpers
def _gelu(x):
    # TODO(synk): torch.nn.GELU() defaults to the exact erf form; tanh approximation is
    # used in-kernel because erf has no guaranteed Mosaic lowering (EUP tanh is cheap).
    c = jnp.float32(0.7978845608028654)  # sqrt(2/pi)
    return 0.5 * x * (1.0 + jnp.tanh(c * (x + 0.044715 * x * x * x)))


def fibonacci_sphere(n):
    # TODO(synk): Ponita's GridGenerator refines the grid with a repulsion scheme; a
    # deterministic Fibonacci sphere is used here as the uniform S^2 orientation grid.
    i = np.arange(n, dtype=np.float64) + 0.5
    phi = np.arccos(1.0 - 2.0 * i / n)
    theta = np.pi * (1.0 + np.sqrt(5.0)) * i
    pts = np.stack([np.cos(theta) * np.sin(phi),
                    np.sin(theta) * np.sin(phi),
                    np.cos(phi)], axis=-1)
    return jnp.asarray(pts, dtype=jnp.float32)


def polynomial_features(x, degree):
    # torch: cat([x, (x (x) x).flatten, ...]) iterated `degree` times
    feats = [x]
    cur = x
    for _ in range(degree):
        cur = (cur[..., :, None] * x[..., None, :]).reshape(x.shape[:-1] + (-1,))
        feats.append(cur)
    return jnp.concatenate(feats, axis=-1)


def _round_up(n, m):
    return ((n + m - 1) // m) * m


def _pad_rows(x, tile):
    r = x.shape[0]
    rp = _round_up(r, tile)
    if rp != r:
        x = jnp.pad(x, ((0, rp - r), (0, 0)))
    return x, rp


def _row_tile(r, base=256):
    # big row tiles (grid-step overhead dominated at tile=64), 16-aligned for bf16 sublanes
    return min(base, _round_up(r, 16))


# ----------------------------------------------------------------------------- small kernels
def _basis_mlp_kernel(p_ref, w1_ref, b1_ref, w2_ref, b2_ref, o_ref):
    # bf16 operands, f32 accumulation on the MXU; GELU stays f32.
    h = jnp.dot(p_ref[...], w1_ref[...], preferred_element_type=jnp.float32) + b1_ref[...]
    h = _gelu(h).astype(jnp.bfloat16)
    o = jnp.dot(h, w2_ref[...], preferred_element_type=jnp.float32) + b2_ref[...]
    o_ref[...] = _gelu(o)


def basis_mlp(poly, w1, b1, w2, b2, base_tile=256):
    r, din = poly.shape
    dh, dout = w1.shape[1], w2.shape[1]
    tile = _row_tile(r, base_tile)
    poly_p, rp = _pad_rows(poly.astype(jnp.bfloat16), tile)
    out = pl.pallas_call(
        _basis_mlp_kernel,
        out_shape=jax.ShapeDtypeStruct((rp, dout), jnp.float32),
        grid=(rp // tile,),
        in_specs=[pl.BlockSpec((tile, din), lambda i: (i, 0)),
                  pl.BlockSpec((din, dh), lambda i: (0, 0)),
                  pl.BlockSpec((1, dh), lambda i: (0, 0)),
                  pl.BlockSpec((dh, dout), lambda i: (0, 0)),
                  pl.BlockSpec((1, dout), lambda i: (0, 0))],
        out_specs=pl.BlockSpec((tile, dout), lambda i: (i, 0)),
        compiler_params=pltpu.CompilerParams(dimension_semantics=("parallel",)),
    )(poly_p, w1.astype(jnp.bfloat16), b1, w2.astype(jnp.bfloat16), b2)
    return out[:r]


def _linear_kernel(x_ref, w_ref, b_ref, o_ref):
    o_ref[...] = jnp.dot(x_ref[...], w_ref[...],
                         preferred_element_type=jnp.float32) + b_ref[...]


def pallas_linear(x, w, b=None, base_tile=256):
    r, din = x.shape
    dout = w.shape[1]
    if b is None:
        b = jnp.zeros((1, dout), jnp.float32)
    tile = _row_tile(r, base_tile)
    xp, rp = _pad_rows(x.astype(jnp.bfloat16), tile)
    out = pl.pallas_call(
        _linear_kernel,
        out_shape=jax.ShapeDtypeStruct((rp, dout), jnp.float32),
        grid=(rp // tile,),
        in_specs=[pl.BlockSpec((tile, din), lambda i: (i, 0)),
                  pl.BlockSpec((din, dout), lambda i: (0, 0)),
                  pl.BlockSpec((1, dout), lambda i: (0, 0))],
        out_specs=pl.BlockSpec((tile, dout), lambda i: (i, 0)),
        compiler_params=pltpu.CompilerParams(dimension_semantics=("parallel",)),
    )(xp, w.astype(jnp.bfloat16), b)
    return out[:r]


# ----------------------------------------------------------------------------- fused layer
def fused_layer(x, kb, fb, lp, ng, num_o):
    """One ConvNext/Ponita interaction layer, fully fused, one graph per program.

    x  : [B, Ng*O, C] f32   node state, rows ordered (node, orientation)  (also residual)
    kb : [B, Ng*Ng*O, Dk] bf16  spatial kernel basis, rows ordered (src j, dst i, o)
    fb : [O*O, Dk] bf16         fiber kernel basis, rows ordered (o_out p, o_in o)
    """
    B, ngo, C = x.shape
    Dk = kb.shape[-1]
    F = lp['w1'].shape[1]

    wk = lp['wk'].astype(jnp.bfloat16)
    wf = (lp['wf'] / float(num_o)).astype(jnp.bfloat16)   # fold 1/num_o into the projection
    w1 = lp['w1'].astype(jnp.bfloat16)
    w2 = lp['w2'].astype(jnp.bfloat16)

    def kernel(x_ref, kb_ref, wk_ref, fb_ref, wf_ref, cb_ref, lng_ref, lnb_ref,
               w1_ref, b1_ref, w2_ref, b2_ref, o_ref):
        x2d = x_ref[0]                                                    # [Ng*O, C]

        # --- spatial depthwise conv, projection fused on the MXU -------------------
        # ke rows ordered (src j, dst i, o); f32 accumulation.
        ke = jnp.dot(kb_ref[0], wk_ref[...],
                     preferred_element_type=jnp.float32)                  # [Ng*Ng*O, C]
        # broadcast x[j, o, :] over dst i by repeating each source's O-row block Ng times
        xrep = jnp.concatenate(
            [jnp.concatenate([x2d[j * num_o:(j + 1) * num_o, :]] * ng, axis=0)
             for j in range(ng)], axis=0)                                 # [Ng*Ng*O, C]
        prod = ke * xrep
        x1 = prod[0:ngo, :]
        for j in range(1, ng):                                            # sum over src j
            x1 = x1 + prod[j * ngo:(j + 1) * ngo, :]                      # [Ng*O, C] rows (i, o)

        # --- fiber (orientation) depthwise conv, projection fused; 1/O pre-folded ---
        fk = jnp.dot(fb_ref[...], wf_ref[...],
                     preferred_element_type=jnp.float32)                  # [O*O, C] rows (p, o)
        x2_blocks = []
        for i in range(ng):                                               # bounded working set
            x1_i = x1[i * num_o:(i + 1) * num_o, :]                       # [O, C]
            pr = fk * jnp.concatenate([x1_i] * num_o, axis=0)             # [O*O, C]
            rows = [jnp.sum(pr[p * num_o:(p + 1) * num_o, :], axis=0, keepdims=True)
                    for p in range(num_o)]
            x2_blocks.append(jnp.concatenate(rows, axis=0))               # [O, C]
        x2 = jnp.concatenate(x2_blocks, axis=0) + cb_ref[...]             # [Ng*O, C]

        # --- LayerNorm over channels (eps = 1e-5, torch default) --------------------
        mu = jnp.mean(x2, axis=-1, keepdims=True)
        var = jnp.mean((x2 - mu) ** 2, axis=-1, keepdims=True)
        xn = (x2 - mu) * jax.lax.rsqrt(var + 1e-5)
        xn = xn * lng_ref[...] + lnb_ref[...]

        # --- ConvNext MLP + residual (layer_scale=None -> plain residual) -----------
        h = _gelu(jnp.dot(xn.astype(jnp.bfloat16), w1_ref[...],
                          preferred_element_type=jnp.float32) + b1_ref[...])
        y = jnp.dot(h.astype(jnp.bfloat16), w2_ref[...],
                    preferred_element_type=jnp.float32) + b2_ref[...]
        o_ref[0] = x2d + y

    return pl.pallas_call(
        kernel,
        out_shape=jax.ShapeDtypeStruct((B, ngo, C), jnp.float32),
        grid=(B,),
        in_specs=[pl.BlockSpec((1, ngo, C), lambda b: (b, 0, 0)),
                  pl.BlockSpec((1, ng * ngo, Dk), lambda b: (b, 0, 0)),
                  pl.BlockSpec((Dk, C), lambda b: (0, 0)),
                  pl.BlockSpec((num_o * num_o, Dk), lambda b: (0, 0)),
                  pl.BlockSpec((Dk, C), lambda b: (0, 0)),
                  pl.BlockSpec((1, C), lambda b: (0, 0)),
                  pl.BlockSpec((1, C), lambda b: (0, 0)),
                  pl.BlockSpec((1, C), lambda b: (0, 0)),
                  pl.BlockSpec((C, F), lambda b: (0, 0)),
                  pl.BlockSpec((1, F), lambda b: (0, 0)),
                  pl.BlockSpec((F, C), lambda b: (0, 0)),
                  pl.BlockSpec((1, C), lambda b: (0, 0))],
        out_specs=pl.BlockSpec((1, ngo, C), lambda b: (b, 0, 0)),
        compiler_params=pltpu.CompilerParams(dimension_semantics=("parallel",)),
    )(x, kb, wk, fb, wf, lp['cb'], lp['ln_g'], lp['ln_b'], w1, lp['b1'], w2, lp['b2'])


# ----------------------------------------------------------------------------- parameters
def _linear_init(key, fan_in, fan_out, bias=True):
    kw, kb = jax.random.split(key)
    bound = 1.0 / float(np.sqrt(fan_in))
    w = jax.random.uniform(kw, (fan_in, fan_out), jnp.float32, -bound, bound)
    if not bias:
        return w
    b = jax.random.uniform(kb, (1, fan_out), jnp.float32, -bound, bound)
    return w, b


def init_params(key, in_channels, out_channels, hidden, layers,
                basis_dim=256, degree=3, widening_factor=4):
    attr_poly_dim = sum(2 ** k for k in range(1, degree + 2))   # attr dim 2 -> 2+4+8+16 = 30
    fiber_poly_dim = degree + 1                                 # fiber attr dim 1 -> 4
    keys = jax.random.split(key, 6 + layers)
    p = {}
    w1, b1 = _linear_init(keys[0], attr_poly_dim, hidden)
    w2, b2 = _linear_init(keys[1], hidden, basis_dim)
    p['basis'] = dict(w1=w1, b1=b1, w2=w2, b2=b2)
    w1, b1 = _linear_init(keys[2], fiber_poly_dim, hidden)
    w2, b2 = _linear_init(keys[3], hidden, basis_dim)
    p['fiber_basis'] = dict(w1=w1, b1=b1, w2=w2, b2=b2)
    p['we'] = _linear_init(keys[4], in_channels, hidden, bias=False)     # x_embedder, no bias
    p['wr'], p['br'] = _linear_init(keys[5], hidden, out_channels)       # readout (last layer only)
    p['layers'] = []
    f = widening_factor * hidden
    for l in range(layers):
        lk = jax.random.split(keys[6 + l], 4)
        wl1, bl1 = _linear_init(lk[2], hidden, f)
        wl2, bl2 = _linear_init(lk[3], f, hidden)
        p['layers'].append(dict(
            wk=_linear_init(lk[0], basis_dim, hidden, bias=False),       # spatial depthwise kernel
            wf=_linear_init(lk[1], basis_dim, hidden, bias=False),       # fiber depthwise kernel
            cb=jnp.zeros((1, hidden), jnp.float32),                      # FiberBundleConv bias (zero init)
            ln_g=jnp.ones((1, hidden), jnp.float32),
            ln_b=jnp.zeros((1, hidden), jnp.float32),
            w1=wl1, b1=bl1, w2=wl2, b2=bl2,
        ))
    return p


# ----------------------------------------------------------------------------- forward
def ponita_forward(params, pos, feats, n_graphs, nodes_per_graph, num_ori=10, degree=3):
    B, Ng, O = n_graphs, nodes_per_graph, num_ori
    ori = fibonacci_sphere(O)                                          # [O, 3]

    # --- lift to position-orientation fiber bundle (PositionOrientationGraph, lift_graph=True)
    pos_g = pos.reshape(B, Ng, 3)
    rel = pos_g[:, None, :, :] - pos_g[:, :, None, :]                  # rel[b,i(dst),j(src)] = pos_j - pos_i
    inv1 = jnp.einsum('bijd,od->bijo', rel, ori)
    perp = rel[:, :, :, None, :] - inv1[..., None] * ori[None, None, None, :, :]
    inv2 = jnp.sqrt(jnp.sum(perp * perp, axis=-1))
    attr = jnp.stack([inv1, inv2], axis=-1)                            # [B,Ng_dst,Ng_src,O,2]
    attr_sm = jnp.swapaxes(attr, 1, 2)                                 # source-major (j, i, o) ordering
    fiber_attr = jnp.sum(ori[:, None, :] * ori[None, :, :], axis=-1, keepdims=True)  # [O,O,1]

    # --- kernel bases (Pallas MLP kernel, bf16 MXU); radius=None -> spatial window == 1
    attr_poly = polynomial_features(attr_sm, degree)
    attr_poly = attr_poly.reshape(-1, attr_poly.shape[-1])             # [B*Ng*Ng*O, 30]
    bp = params['basis']
    kb = basis_mlp(attr_poly, bp['w1'], bp['b1'], bp['w2'], bp['b2'])  # [R, basis_dim]
    kb = kb.reshape(B, Ng * Ng * O, -1).astype(jnp.bfloat16)           # layer-invariant, kept bf16

    fiber_poly = polynomial_features(fiber_attr, degree)
    fiber_poly = fiber_poly.reshape(-1, fiber_poly.shape[-1])          # [O*O, 4]
    fp = params['fiber_basis']
    fb = basis_mlp(fiber_poly, fp['w1'], fp['b1'], fp['w2'], fp['b2']).astype(jnp.bfloat16)

    # --- initial node embedding (bias-free Linear), lifted over orientations
    x = pallas_linear(feats, params['we'])                             # [N, C]
    C = x.shape[-1]
    x = jnp.broadcast_to(x.reshape(B, Ng, 1, C), (B, Ng, O, C)).reshape(B, Ng * O, C)

    # --- interaction layers (fused projection + separable conv + LN + MLP + residual)
    # TODO(synk): FiberBundleConv's training-time auto-"callibration" (data-dependent weight
    # rescaling) is skipped; it is a one-shot re-init, not part of steady-state semantics.
    for lp in params['layers']:
        x = fused_layer(x, kb, fb, lp, Ng, O)                          # [B, Ng*O, C]

    # --- readout: multiple_readouts=False -> last layer only; output_dim_vec=0 -> scalar only
    r = pallas_linear(x.reshape(-1, C), params['wr'], params['br'])
    r = r.reshape(B, Ng, O, -1)
    # glue: mean over orientations, global add-pool over nodes (task_level='graph')
    scalar_out = r.mean(axis=2).sum(axis=1)                            # [B, out_channels]

    # MyPonita returns (scalar_out, coords); autograd tracking of coords is a no-op here.
    return scalar_out, pos


# ----------------------------------------------------------------------------- main
if __name__ == "__main__":
    in_channels, out_channels, hidden_features, hidden_layers = 4, 3, 32, 2
    n_graphs, nodes_per_graph = 2, 4
    num_nodes = n_graphs * nodes_per_graph

    key = jax.random.PRNGKey(0)
    k_pos, k_x, k_par = jax.random.split(key, 3)
    pos = jax.random.normal(k_pos, (num_nodes, 3), jnp.float32)                 # graph.pos
    node_feats = jax.random.normal(k_x, (num_nodes, in_channels), jnp.float32)  # graph.x
    # graph.batch is implicit: n_graphs graphs of nodes_per_graph nodes each (fully connected).

    params = init_params(k_par, in_channels, out_channels, hidden_features, hidden_layers)

    scalar_out, coords = ponita_forward(params, pos, node_feats,
                                        n_graphs, nodes_per_graph, num_ori=10, degree=3)
    scalar_out = jax.block_until_ready(scalar_out)
    coords = jax.block_until_ready(coords)
    assert scalar_out.shape == (n_graphs, out_channels)
    assert coords.shape == (num_nodes, 3)
    print("KERNEL_OK")
</pallas_src>

<mosaic_0001>
module attributes {stable_mosaic.version = 11 : i64} {
  func.func @_basis_mlp_kernel(%arg0: i32, %arg1: memref<256x30xbf16, #tpu.memory_space<vmem>>, %arg2: memref<30x32xbf16, #tpu.memory_space<vmem>>, %arg3: memref<1x32xf32, #tpu.memory_space<vmem>>, %arg4: memref<32x256xbf16, #tpu.memory_space<vmem>>, %arg5: memref<1x256xf32, #tpu.memory_space<vmem>>, %arg6: memref<256x256xf32, #tpu.memory_space<vmem>>) attributes {dimension_semantics = [#tpu.dimension_semantics<parallel>], iteration_bounds = array<i64: 2>, scalar_prefetch = 0 : i64, scratch_operands = 0 : i64, tpu.core_type = #tpu.core_type<tc>, window_params = [{transform_indices = @transform_0, window_bounds = array<i64: 256, 30>}, {pipeline_mode = #tpu.pipeline_mode<synchronous>, transform_indices = @transform_1, window_bounds = array<i64: 30, 32>}, {pipeline_mode = #tpu.pipeline_mode<synchronous>, transform_indices = @transform_2, window_bounds = array<i64: 1, 32>}, {pipeline_mode = #tpu.pipeline_mode<synchronous>, transform_indices = @transform_3, window_bounds = array<i64: 32, 256>}, {pipeline_mode = #tpu.pipeline_mode<synchronous>, transform_indices = @transform_4, window_bounds = array<i64: 1, 256>}, {transform_indices = @transform_5, window_bounds = array<i64: 256, 256>}]} {
    %c0 = arith.constant 0 : index
    %c0_0 = arith.constant 0 : index
    %0 = vector.load %arg1[%c0, %c0_0] : memref<256x30xbf16, #tpu.memory_space<vmem>>, vector<256x30xbf16>
    %c0_1 = arith.constant 0 : index
    %c0_2 = arith.constant 0 : index
    %1 = vector.load %arg2[%c0_1, %c0_2] : memref<30x32xbf16, #tpu.memory_space<vmem>>, vector<30x32xbf16>
    %cst = arith.constant dense<0.000000e+00> : vector<256x32xf32>
    %2 = tpu.matmul %0, %1, %cst {dimension_numbers = #tpu.dot_dimension_numbers<[1], [0], [0], [1], [0, 0, 1, 1], [], []>} : vector<256x30xbf16>, vector<30x32xbf16>, vector<256x32xf32> -> vector<256x32xf32>
    %c0_3 = arith.constant 0 : index
    %c0_4 = arith.constant 0 : index
    %3 = vector.load %arg3[%c0_3, %c0_4] : memref<1x32xf32, #tpu.memory_space<vmem>>, vector<1x32xf32>
    %4 = vector.broadcast %3 : vector<1x32xf32> to vector<256x32xf32>
    %5 = arith.addf %2, %4 : vector<256x32xf32>
    %cst_5 = arith.constant 5.000000e-01 : f32
    %6 = vector.broadcast %cst_5 : f32 to vector<256x32xf32>
    %7 = arith.mulf %6, %5 : vector<256x32xf32>
    %cst_6 = arith.constant 4.471500e-02 : f32
    %8 = vector.broadcast %cst_6 : f32 to vector<256x32xf32>
    %9 = arith.mulf %8, %5 : vector<256x32xf32>
    %10 = arith.mulf %9, %5 : vector<256x32xf32>
    %11 = arith.mulf %10, %5 : vector<256x32xf32>
    %12 = arith.addf %5, %11 : vector<256x32xf32>
    %cst_7 = arith.constant 0.797884583 : f32
    %13 = vector.broadcast %cst_7 : f32 to vector<256x32xf32>
    %14 = arith.mulf %13, %12 : vector<256x32xf32>
    %15 = math.tanh %14 : vector<256x32xf32>
    %cst_8 = arith.constant 1.000000e+00 : f32
    %16 = vector.broadcast %cst_8 : f32 to vector<256x32xf32>
    %17 = arith.addf %16, %15 : vector<256x32xf32>
    %18 = arith.mulf %7, %17 : vector<256x32xf32>
    %19 = arith.truncf %18 : vector<256x32xf32> to vector<256x32xbf16>
    %c0_9 = arith.constant 0 : index
    %c0_10 = arith.constant 0 : index
    %20 = vector.load %arg4[%c0_9, %c0_10] : memref<32x256xbf16, #tpu.memory_space<vmem>>, vector<32x256xbf16>
    %cst_11 = arith.constant dense<0.000000e+00> : vector<256x256xf32>
    %21 = tpu.matmul %19, %20, %cst_11 {dimension_numbers = #tpu.dot_dimension_numbers<[1], [0], [0], [1], [0, 0, 1, 1], [], []>} : vector<256x32xbf16>, vector<32x256xbf16>, vector<256x256xf32> -> vector<256x256xf32>
    %c0_12 = arith.constant 0 : index
    %c0_13 = arith.constant 0 : index
    %22 = vector.load %arg5[%c0_12, %c0_13] : memref<1x256xf32, #tpu.memory_space<vmem>>, vector<1x256xf32>
    %23 = vector.broadcast %22 : vector<1x256xf32> to vector<256x256xf32>
    %24 = arith.addf %21, %23 : vector<256x256xf32>
    %cst_14 = arith.constant 5.000000e-01 : f32
    %25 = vector.broadcast %cst_14 : f32 to vector<256x256xf32>
    %26 = arith.mulf %25, %24 : vector<256x256xf32>
    %cst_15 = arith.constant 4.471500e-02 : f32
    %27 = vector.broadcast %cst_15 : f32 to vector<256x256xf32>
    %28 = arith.mulf %27, %24 : vector<256x256xf32>
    %29 = arith.mulf %28, %24 : vector<256x256xf32>
    %30 = arith.mulf %29, %24 : vector<256x256xf32>
    %31 = arith.addf %24, %30 : vector<256x256xf32>
    %cst_16 = arith.constant 0.797884583 : f32
    %32 = vector.broadcast %cst_16 : f32 to vector<256x256xf32>
    %33 = arith.mulf %32, %31 : vector<256x256xf32>
    %34 = math.tanh %33 : vector<256x256xf32>
    %cst_17 = arith.constant 1.000000e+00 : f32
    %35 = vector.broadcast %cst_17 : f32 to vector<256x256xf32>
    %36 = arith.addf %35, %34 : vector<256x256xf32>
    %37 = arith.mulf %26, %36 : vector<256x256xf32>
    %c0_18 = arith.constant 0 : index
    %c0_19 = arith.constant 0 : index
    %38 = vector.load %arg6[%c0_18, %c0_19] : memref<256x256xf32, #tpu.memory_space<vmem>>, vector<256x256xf32>
    tpu.vector_store %arg6[%c0_18, %c0_19], %37 {strides = array<i32>} : memref<256x256xf32, #tpu.memory_space<vmem>>, vector<256x256xf32>,
    return
  }
  func.func @transform_0(%arg0: i32) -> (i32, i32) {
    %c0_i32 = arith.constant 0 : i32
    %c0_i32_0 = arith.constant 0 : i32
    return %arg0, %c0_i32 : i32, i32
  }
  func.func @transform_1(%arg0: i32) -> (i32, i32) {
    %c0_i32 = arith.constant 0 : i32
    %c0_i32_0 = arith.constant 0 : i32
    %c0_i32_1 = arith.constant 0 : i32
    return %c0_i32, %c0_i32_0 : i32, i32
  }
  func.func @transform_2(%arg0: i32) -> (i32, i32) {
    %c0_i32 = arith.constant 0 : i32
    %c0_i32_0 = arith.constant 0 : i32
    %c0_i32_1 = arith.constant 0 : i32
    return %c0_i32, %c0_i32_0 : i32, i32
  }
  func.func @transform_3(%arg0: i32) -> (i32, i32) {
    %c0_i32 = arith.constant 0 : i32
    %c0_i32_0 = arith.constant 0 : i32
    %c0_i32_1 = arith.constant 0 : i32
    return %c0_i32, %c0_i32_0 : i32, i32
  }
  func.func @transform_4(%arg0: i32) -> (i32, i32) {
    %c0_i32 = arith.constant 0 : i32
    %c0_i32_0 = arith.constant 0 : i32
    %c0_i32_1 = arith.constant 0 : i32
    return %c0_i32, %c0_i32_0 : i32, i32
  }
  func.func @transform_5(%arg0: i32) -> (i32, i32) {
    %c0_i32 = arith.constant 0 : i32
    %c0_i32_0 = arith.constant 0 : i32
    return %arg0, %c0_i32 : i32, i32
  }
}

</mosaic_0001>

<llo_original>
// kernel: tpu_custom_call.1
$region0: #{tpu_custom_call.1}
  #allocation0 [shape = 'u32[]', space=smem, size = 0x4, offset = 0x4, fixed_abs, tag = 'smem constant byte address 0x4 - core index']
  #allocation1 [shape = 'u32[72,128]{1,0:T(1,128)}', space=vmem, size = 0x9000, scoped, tag = 'internal scratch']
  %s0 = inlined_call_operand.vmem [shape: bf16[512,30], index: 0, kind: input, shape index: {}]
  %s1 = inlined_call_operand.vmem [shape: bf16[30,32], index: 1, kind: input, shape index: {}]
  %s2 = inlined_call_operand.vmem [shape: f32[1,32], index: 2, kind: input, shape index: {}]
  %s3 = inlined_call_operand.vmem [shape: bf16[32,256], index: 3, kind: input, shape index: {}]
  %s4 = inlined_call_operand.vmem [shape: f32[1,256], index: 4, kind: input, shape index: {}]
  %s5 = inlined_call_operand.hbm [shape: f32[512,256], index: 5, kind: output, shape index: {}]
  %s6 = sld [smem:[#allocation0]]
  $region53: #{tpu_custom_call.1} parent=0
    _
  %s8 = ssub.s32 1, %s6
  %s9 = scalar_select 0, %s8, %s6
  $region1: #{tpu_custom_call.1} parent=0
    #allocation2 [shape = 'u8[524288]{0}', space=vmem, size = 0x80000, scoped, tag = 'output window, operand 0']
    #allocation3 [shape = 's32[2]{0}', space=sflag, size = 0x8, scoped, tag = 'scoped memory for tpu_custom_call.1']
    %10 = vsyncpa [#allocation3], 0
    %s11 = scalar_lea.sflag [#allocation3], 1
    %12 = vsyncpa %s11, 0
    loop: start=0, step=1, limit=4
    $region2: #{tpu_custom_call.1} parent=1 // loop_pre_header
      _
    $region3: #{tpu_custom_call.1} parent=1 // loop_header
      %s14 = sphi 0, %s18
      %p15 = scmp.ge.s32.totalorder %s14, 4
      %s24 = sphi 0, %s26
      %s27 = sphi 0, %s24
      %s28 = sphi 0, %s27
      %s44 = sphi 0, %s28
      %s48 = sphi 0, %s48
      %s50 = sphi 0, %s48
      %s51 = sphi 0, %s50
      %s65 = sphi 0, %s51
      %s69 = sphi 0, %s69
      %s71 = sphi 0, %s69
      %s72 = sphi 0, %s71
      %s86 = sphi 0, %s72
      %s90 = sphi 0, %s90
      %s92 = sphi 0, %s90
      %s93 = sphi 0, %s92
      %s107 = sphi 0, %s93
      %s111 = sphi 0, %s111
      %s113 = sphi 0, %s111
      %s114 = sphi 0, %s113
      %s128 = sphi 0, %s114
      %s134 = sphi 0, %s136
      %s137 = sphi 0, %s134
      %s138 = sphi 0, %s137
      %s154 = sphi 0, %s138
    $region4: #{tpu_custom_call.1} parent=1 // loop_header_branch
      %17 = sbr.rel (%p15) target = $region8
    $region5: #{tpu_custom_call.1} parent=1 // loop_body
      %s19 = ssub.s32 %s14, 1
      %s20 = ssub.s32 %s14, 2
      %s21 = sadd.s32 %s14, 1
      %s22 = ssub.s32 %s14, %s21
      %p23 = scmp.eq.s32.totalorder %s22, 0
      %s25 = sadd.s32 %s24, 1
      %s26 = scalar_select %p23, %s24, %s25
      %p29 = pneg %p23
      %p30 = scmp.eq.s32.totalorder %s14, 1
      %p31 = por %p29, %p30
      %p32 = scmp.ne.s32.totalorder %s24, %s27
      %p33 = scmp.eq.s32.totalorder %s14, 0
      %p34 = por %p32, %p33
      %p35 = scmp.ne.s32.totalorder %s24, %s27
      %p36 = scmp.eq.s32.totalorder %s19, 1
      %p37 = por %p35, %p36
      %p38 = scmp.ne.s32.totalorder %s27, %s28
      %p39 = scmp.eq.s32.totalorder %s19, 0
      %p40 = por %p38, %p39
      %p41 = scmp.ne.s32.totalorder %s27, %s28
      %p42 = scmp.eq.s32.totalorder %s20, 1
      %p43 = por %p41, %p42
      %p45 = scmp.ne.s32.totalorder %s28, %s44
      %p46 = scmp.eq.s32.totalorder %s20, 0
      %p47 = por %p45, %p46
      %s49 = sadd.s32 %s48, 1
      %p52 = scmp.eq.s32.totalorder %s14, 1
      %p53 = scmp.ne.s32.totalorder %s48, %s50
      %p54 = scmp.eq.s32.totalorder %s14, 0
      %p55 = por %p53, %p54
      %p56 = scmp.ne.s32.totalorder %s48, %s50
      %p57 = scmp.eq.s32.totalorder %s19, 1
      %p58 = por %p56, %p57
      %p59 = scmp.ne.s32.totalorder %s50, %s51
      %p60 = scmp.eq.s32.totalorder %s19, 0
      %p61 = por %p59, %p60
      %p62 = scmp.ne.s32.totalorder %s50, %s51
      %p63 = scmp.eq.s32.totalorder %s20, 1
      %p64 = por %p62, %p63
      %p66 = scmp.ne.s32.totalorder %s51, %s65
      %p67 = scmp.eq.s32.totalorder %s20, 0
      %p68 = por %p66, %p67
      %s70 = sadd.s32 %s69, 1
      %p73 = scmp.eq.s32.totalorder %s14, 1
      %p74 = scmp.ne.s32.totalorder %s69, %s71
      %p75 = scmp.eq.s32.totalorder %s14, 0
      %p76 = por %p74, %p75
      %p77 = scmp.ne.s32.totalorder %s69, %s71
      %p78 = scmp.eq.s32.totalorder %s19, 1
      %p79 = por %p77, %p78
      %p80 = scmp.ne.s32.totalorder %s71, %s72
      %p81 = scmp.eq.s32.totalorder %s19, 0
      %p82 = por %p80, %p81
      %p83 = scmp.ne.s32.totalorder %s71, %s72
      %p84 = scmp.eq.s32.totalorder %s20, 1
      %p85 = por %p83, %p84
      %p87 = scmp.ne.s32.totalorder %s72, %s86
      %p88 = scmp.eq.s32.totalorder %s20, 0
      %p89 = por %p87, %p88
      %s91 = sadd.s32 %s90, 1
      %p94 = scmp.eq.s32.totalorder %s14, 1
      %p95 = scmp.ne.s32.totalorder %s90, %s92
      %p96 = scmp.eq.s32.totalorder %s14, 0
      %p97 = por %p95, %p96
      %p98 = scmp.ne.s32.totalorder %s90, %s92
      %p99 = scmp.eq.s32.totalorder %s19, 1
      %p100 = por %p98, %p99
      %p101 = scmp.ne.s32.totalorder %s92, %s93
      %p102 = scmp.eq.s32.totalorder %s19, 0
      %p103 = por %p101, %p102
      %p104 = scmp.ne.s32.totalorder %s92, %s93
      %p105 = scmp.eq.s32.totalorder %s20, 1
      %p106 = por %p104, %p105
      %p108 = scmp.ne.s32.totalorder %s93, %s107
      %p109 = scmp.eq.s32.totalorder %s20, 0
      %p110 = por %p108, %p109
      %s112 = sadd.s32 %s111, 1
      %p115 = scmp.eq.s32.totalorder %s14, 1
      %p116 = scmp.ne.s32.totalorder %s111, %s113
      %p117 = scmp.eq.s32.totalorder %s14, 0
      %p118 = por %p116, %p117
      %p119 = scmp.ne.s32.totalorder %s111, %s113
      %p120 = scmp.eq.s32.totalorder %s19, 1
      %p121 = por %p119, %p120
      %p122 = scmp.ne.s32.totalorder %s113, %s114
      %p123 = scmp.eq.s32.totalorder %s19, 0
      %p124 = por %p122, %p123
      %p125 = scmp.ne.s32.totalorder %s113, %s114
      %p126 = scmp.eq.s32.totalorder %s20, 1
      %p127 = por %p125, %p126
      %p129 = scmp.ne.s32.totalorder %s114, %s128
      %p130 = scmp.eq.s32.totalorder %s20, 0
      %p131 = por %p129, %p130
      %s132 = ssub.s32 %s14, %s21
      %p133 = scmp.eq.s32.totalorder %s132, 0
      %s135 = sadd.s32 %s134, 1
      %s136 = scalar_select %p133, %s134, %s135
      %p139 = pneg %p133
      %p140 = scmp.eq.s32.totalorder %s14, 1
      %p141 = por %p139, %p140
      %p142 = scmp.ne.s32.totalorder %s134, %s137
      %p143 = scmp.eq.s32.totalorder %s14, 0
      %p144 = por %p142, %p143
      %p145 = scmp.ne.s32.totalorder %s134, %s137
      %p146 = scmp.eq.s32.totalorder %s19, 1
      %p147 = por %p145, %p146
      %p148 = scmp.ne.s32.totalorder %s137, %s138
      %p149 = scmp.eq.s32.totalorder %s19, 0
      %p150 = por %p148, %p149
      %p151 = scmp.ne.s32.totalorder %s137, %s138
      %p152 = scmp.eq.s32.totalorder %s20, 1
      %p153 = por %p151, %p152
      %p155 = scmp.ne.s32.totalorder %s138, %s154
      %p156 = scmp.eq.s32.totalorder %s20, 0
      %p157 = por %p155, %p156
      %p158 = scmp.le.s32.totalorder 1, %s14
      %p159 = scmp.lt.s32.totalorder %s14, 3
      %p160 = pnand %p158, %p159
      %p161 = pneg %p160
      // Predicated region
      $region9: #{tpu_custom_call.1} parent=5 // pred_check
        _
      $region10: #{tpu_custom_call.1} parent=5 // pred_check_branch
        %163 = sbr.rel (%p160) target = $region12
      $region11: #{tpu_custom_call.1} parent=5 // pred_region
        %s164 = ssub.s32 %s14, 1
        // Predicated region
        $region13: #{tpu_custom_call.1} parent=11 // pred_check
          %p165 = pneg %p61
        $region14: #{tpu_custom_call.1} parent=11 // pred_check_branch
          %167 = sbr.rel (%p165) target = $region16
        $region15: #{tpu_custom_call.1} parent=11 // pred_region
          _
        $region16: #{tpu_custom_call.1} parent=11 // pred_fallthru
          _
        // Predicated region
        $region17: #{tpu_custom_call.1} parent=11 // pred_check
          %p168 = pneg %p82
        $region18: #{tpu_custom_call.1} parent=11 // pred_check_branch
          %170 = sbr.rel (%p168) target = $region20
        $region19: #{tpu_custom_call.1} parent=11 // pred_region
          _
        $region20: #{tpu_custom_call.1} parent=11 // pred_fallthru
          _
        // Predicated region
        $region21: #{tpu_custom_call.1} parent=11 // pred_check
          %p171 = pneg %p103
        $region22: #{tpu_custom_call.1} parent=11 // pred_check_branch
          %173 = sbr.rel (%p171) target = $region24
        $region23: #{tpu_custom_call.1} parent=11 // pred_region
          _
        $region24: #{tpu_custom_call.1} parent=11 // pred_fallthru
          _
        // Predicated region
        $region25: #{tpu_custom_call.1} parent=11 // pred_check
          %p174 = pneg %p124
        $region26: #{tpu_custom_call.1} parent=11 // pred_check_branch
          %176 = sbr.rel (%p174) target = $region28
        $region27: #{tpu_custom_call.1} parent=11 // pred_region
          _
        $region28: #{tpu_custom_call.1} parent=11 // pred_fallthru
          _
      $region12: #{tpu_custom_call.1} parent=5 // pred_fallthru
        _
      %p177 = scmp.lt.s32.totalorder %s14, 2
      // Predicated region
      $region29: #{tpu_custom_call.1} parent=5 // pred_check
        %p178 = pneg %p177
      $region30: #{tpu_custom_call.1} parent=5 // pred_check_branch
        %180 = sbr.rel (%p178) target = $region32
      $region31: #{tpu_custom_call.1} parent=5 // pred_region
        // Predicated region
        $region33: #{tpu_custom_call.1} parent=31 // pred_check
          %p181 = pneg %p34
        $region34: #{tpu_custom_call.1} parent=31 // pred_check_branch
          %183 = sbr.rel (%p181) target = $region36
        $region35: #{tpu_custom_call.1} parent=31 // pred_region
          %s184 = smul.u32 32, %s14
          %p185 = scmp.lt.s32.totalorder %s184, 63
          %s186 = scalar_select %p185, %s184, 63
          %s187 = smul.addr %s186, 4
          %s188 = scalar_lea.vmem %s0, %s187
          %s189 = smul.u32 32, %s14
        $region36: #{tpu_custom_call.1} parent=31 // pred_fallthru
          _
      $region32: #{tpu_custom_call.1} parent=5 // pred_fallthru
        _
      %p190 = scmp.le.s32.totalorder 1, %s14
      %p191 = scmp.lt.s32.totalorder %s14, 3
      %p192 = pnand %p190, %p191
      %p193 = pneg %p192
      // Predicated region
      $region37: #{tpu_custom_call.1} parent=5 // pred_check
        _
      $region38: #{tpu_custom_call.1} parent=5 // pred_check_branch
        %195 = sbr.rel (%p192) target = $region40
      $region39: #{tpu_custom_call.1} parent=5 // pred_region
        %s196 = ssub.s32 %s14, 1
        %s197 = smul.u32 32, %s19
        %p198 = scmp.lt.s32.totalorder %s197, 63
        %s199 = scalar_select %p198, %s197, 63
        %s200 = smul.addr %s199, 4
        %s201 = scalar_lea.vmem %s0, %s200
        %p202 = pneg %p40
        %p203 = pneg %p37
        %p204 = pneg %p61
        %p205 = pneg %p58
        %p206 = pneg %p82
        %p207 = pneg %p79
        %p208 = pneg %p103
        %p209 = pneg %p100
        %p210 = pneg %p124
        %p211 = pneg %p121
        %p212 = pneg %p150
        %p213 = pneg %p147
        %s214 = sand.u32 %s137, 1
        %s215 = scalar_lea.sflag [#allocation3], %s214
        %s216 = sand.u32 %s137, 1
        %s217 = smul.addr %s216, 512
        %s218 = scalar_lea.vmem [#allocation2], %s217
        %s219 = smul.u32 32, %s19
        %p220 = scmp.lt.s32.totalorder %s219, 63
        %s221 = scalar_select %p220, %s219, 63
        %s222 = smul.addr %s221, 4
        %s223 = scalar_lea.vmem %s0, %s222
        %s224 = smul.u32 32, %s19
        %s225 = smul.u32 32, %s19
        %v227 = vld [vmem:[%s223] sm:$0xf]
        %v228 = vld [vmem:[%s223 + $0x4] sm:$0xf]
        %v229 = vld [vmem:[%s223 + $0x8] sm:$0xf]
        %v230 = vld [vmem:[%s223 + $0xc] sm:$0xf]
        %v231 = vld [vmem:[%s223 + $0x10] sm:$0xf]
        %v232 = vld [vmem:[%s223 + $0x14] sm:$0xf]
        %v233 = vld [vmem:[%s223 + $0x18] sm:$0xf]
        %v234 = vld [vmem:[%s223 + $0x1c] sm:$0xf]
        %v235 = vld [vmem:[%s223 + $0x20] sm:$0xf]
        %v236 = vld [vmem:[%s223 + $0x24] sm:$0xf]
        %v237 = vld [vmem:[%s223 + $0x28] sm:$0xf]
        %v238 = vld [vmem:[%s223 + $0x2c] sm:$0xf]
        %v239 = vld [vmem:[%s223 + $0x30] sm:$0xf]
        %v240 = vld [vmem:[%s223 + $0x34] sm:$0xf]
        %v241 = vld [vmem:[%s223 + $0x38] sm:$0xf]
        %v242 = vld [vmem:[%s223 + $0x3c] sm:$0xf]
        %v243 = vld [vmem:[%s223 + $0x40] sm:$0xf]
        %v244 = vld [vmem:[%s223 + $0x44] sm:$0xf]
        %v245 = vld [vmem:[%s223 + $0x48] sm:$0xf]
        %v246 = vld [vmem:[%s223 + $0x4c] sm:$0xf]
        %v247 = vld [vmem:[%s223 + $0x50] sm:$0xf]
        %v248 = vld [vmem:[%s223 + $0x54] sm:$0xf]
        %v249 = vld [vmem:[%s223 + $0x58] sm:$0xf]
        %v250 = vld [vmem:[%s223 + $0x5c] sm:$0xf]
        %v251 = vld [vmem:[%s223 + $0x60] sm:$0xf]
        %v252 = vld [vmem:[%s223 + $0x64] sm:$0xf]
        %v253 = vld [vmem:[%s223 + $0x68] sm:$0xf]
        %v254 = vld [vmem:[%s223 + $0x6c] sm:$0xf]
        %v255 = vld [vmem:[%s223 + $0x70] sm:$0xf]
        %v256 = vld [vmem:[%s223 + $0x74] sm:$0xf]
        %v257 = vld [vmem:[%s223 + $0x78] sm:$0xf]
        %v258 = vld [vmem:[%s223 + $0x7c] sm:$0xf]
        %v259 = vld [vmem:[%s1] sm:$0xf]
        %v260 = vld [vmem:[%s1 + $0x4] sm:$0xf]
        %v261 = vld [vmem:[%s1 + $0x8] sm:$0xf]
        %v262 = vld [vmem:[%s1 + $0xc] sm:$0x7]
        %v263 = vld [vmem:[%s2] sm:$0x1]
        %v265 = vperm.slane %v263, 0
        %v299 = vunpack.c.l.b16 %v227
        %v300 = vunpack.c.l.b16 %v228
        %v301 = vunpack.c.l.b16 %v229
        %v302 = vunpack.c.l.b16 %v230
        %v303 = vunpack.c.l.b16 %v231
        %v304 = vunpack.c.l.b16 %v232
        %v305 = vunpack.c.l.b16 %v233
        %v306 = vunpack.c.l.b16 %v234
        %v307 = vunpack.c.l.b16 %v235
        %v308 = vunpack.c.l.b16 %v236
        %v309 = vunpack.c.l.b16 %v237
        %v310 = vunpack.c.l.b16 %v238
        %v311 = vunpack.c.l.b16 %v239
        %v312 = vunpack.c.l.b16 %v240
        %v313 = vunpack.c.l.b16 %v241
        %v314 = vunpack.c.l.b16 %v242
        %v315 = vunpack.c.l.b16 %v243
        %v316 = vunpack.c.l.b16 %v244
        %v317 = vunpack.c.l.b16 %v245
        %v318 = vunpack.c.l.b16 %v246
        %v319 = vunpack.c.l.b16 %v247
        %v320 = vunpack.c.l.b16 %v248
        %v321 = vunpack.c.l.b16 %v249
        %v322 = vunpack.c.l.b16 %v250
        %v323 = vunpack.c.l.b16 %v251
        %v324 = vunpack.c.l.b16 %v252
        %v325 = vunpack.c.l.b16 %v253
        %v326 = vunpack.c.l.b16 %v254
        %v327 = vunpack.c.l.b16 %v255
        %v328 = vunpack.c.l.b16 %v256
        %v329 = vunpack.c.l.b16 %v257
        %v330 = vunpack.c.l.b16 %v258
        %v331 = vpack.c.b16 %v300, %v299
        %v332 = vpack.c.b16 %v302, %v301
        %v333 = vpack.c.b16 %v304, %v303
        %v334 = vpack.c.b16 %v306, %v305
        %v335 = vpack.c.b16 %v308, %v307
        %v336 = vpack.c.b16 %v310, %v309
        %v337 = vpack.c.b16 %v312, %v311
        %v338 = vpack.c.b16 %v314, %v313
        %v339 = vpack.c.b16 %v316, %v315
        %v340 = vpack.c.b16 %v318, %v317
        %v341 = vpack.c.b16 %v320, %v319
        %v342 = vpack.c.b16 %v322, %v321
        %v343 = vpack.c.b16 %v324, %v323
        %v344 = vpack.c.b16 %v326, %v325
        %v345 = vpack.c.b16 %v328, %v327
        %v346 = vpack.c.b16 %v330, %v329
        %v351 = vunpack.c.l.b16 %v259
        %v352 = vunpack.c.l.b16 %v260
        %v353 = vunpack.c.l.b16 %v261
        %v354 = vunpack.c.l.b16 %v262
        %v355 = vpack.c.b16 %v352, %v351
        %v356 = vpack.c.b16 %v354, %v353
        %vm358 = vcmask 244736
        %v360 = vsel %vm358, %v331, 0
        %v363 = vsel %vm358, %v332, 0
        %v366 = vsel %vm358, %v333, 0
        %v369 = vsel %vm358, %v334, 0
        %v372 = vsel %vm358, %v335, 0
        %v375 = vsel %vm358, %v336, 0
        %v378 = vsel %vm358, %v337, 0
        %v381 = vsel %vm358, %v338, 0
        %v384 = vsel %vm358, %v339, 0
        %v387 = vsel %vm358, %v340, 0
        %v390 = vsel %vm358, %v341, 0
        %v393 = vsel %vm358, %v342, 0
        %v396 = vsel %vm358, %v343, 0
        %v399 = vsel %vm358, %v344, 0
        %v402 = vsel %vm358, %v345, 0
        %v405 = vsel %vm358, %v346, 0
        %vm407 = vcmask 1046528
        %v409 = vsel %vm407, %v356, 0
        %411 = vmatpush.bf16.msra.mxu0 0
        %412 = vmatpush.bf16.msra.mxu0 0
        %413 = vmatpush.bf16.msra.mxu0 0
        %414 = vmatpush.bf16.msra.mxu0 0
        %415 = vmatpush.bf16.msra.mxu0 0
        %416 = vmatpush.bf16.msra.mxu0 0
        %417 = vmatpush.bf16.msra.mxu0 %v409
        %418 = vmatpush.bf16.msra.mxu0 %v355
        %419 = vmatmul.bf16.gmra.mxu0 %v360
        %v420 = vpop.f32.mrf.mxu0
        %v421 = vadd.f32 %v265, %v420
        %v422 = vpop.f32.mrf.mxu0
        %v423 = vadd.f32 %v265, %v422
        %424 = vmatmul.bf16.gmra.mxu0 %v363
        %v425 = vpop.f32.mrf.mxu0
        %v426 = vadd.f32 %v265, %v425
        %v427 = vpop.f32.mrf.mxu0
        %v428 = vadd.f32 %v265, %v427
        %429 = vmatmul.bf16.gmra.mxu0 %v366
        %v430 = vpop.f32.mrf.mxu0
        %v431 = vadd.f32 %v265, %v430
        %v432 = vpop.f32.mrf.mxu0
        %v433 = vadd.f32 %v265, %v432
        %434 = vmatmul.bf16.gmra.mxu0 %v369
        %v435 = vpop.f32.mrf.mxu0
        %v436 = vadd.f32 %v265, %v435
        %v437 = vpop.f32.mrf.mxu0
        %v438 = vadd.f32 %v265, %v437
        %439 = vmatmul.bf16.gmra.mxu0 %v372
        %v440 = vpop.f32.mrf.mxu0
        %v441 = vadd.f32 %v265, %v440
        %v442 = vpop.f32.mrf.mxu0
        %v443 = vadd.f32 %v265, %v442
        %444 = vmatmul.bf16.gmra.mxu0 %v375
        %v445 = vpop.f32.mrf.mxu0
        %v446 = vadd.f32 %v265, %v445
        %v447 = vpop.f32.mrf.mxu0
        %v448 = vadd.f32 %v265, %v447
        %449 = vmatmul.bf16.gmra.mxu0 %v378
        %v450 = vpop.f32.mrf.mxu0
        %v451 = vadd.f32 %v265, %v450
        %v452 = vpop.f32.mrf.mxu0
        %v453 = vadd.f32 %v265, %v452
        %454 = vmatmul.bf16.gmra.mxu0 %v381
        %v455 = vpop.f32.mrf.mxu0
        %v456 = vadd.f32 %v265, %v455
        %v457 = vpop.f32.mrf.mxu0
        %v458 = vadd.f32 %v265, %v457
        %459 = vmatmul.bf16.gmra.mxu0 %v384
        %v460 = vpop.f32.mrf.mxu0
        %v461 = vadd.f32 %v265, %v460
        %v462 = vpop.f32.mrf.mxu0
        %v463 = vadd.f32 %v265, %v462
        %464 = vmatmul.bf16.gmra.mxu0 %v387
        %v465 = vpop.f32.mrf.mxu0
        %v466 = vadd.f32 %v265, %v465
        %v467 = vpop.f32.mrf.mxu0
        %v468 = vadd.f32 %v265, %v467
        %469 = vmatmul.bf16.gmra.mxu0 %v390
        %v470 = vpop.f32.mrf.mxu0
        %v471 = vadd.f32 %v265, %v470
        %v472 = vpop.f32.mrf.mxu0
        %v473 = vadd.f32 %v265, %v472
        %474 = vmatmul.bf16.gmra.mxu0 %v393
        %v475 = vpop.f32.mrf.mxu0
        %v476 = vadd.f32 %v265, %v475
        %v477 = vpop.f32.mrf.mxu0
        %v478 = vadd.f32 %v265, %v477
        %479 = vmatmul.bf16.gmra.mxu0 %v396
        %v480 = vpop.f32.mrf.mxu0
        %v481 = vadd.f32 %v265, %v480
        %v482 = vpop.f32.mrf.mxu0
        %v483 = vadd.f32 %v265, %v482
        %484 = vmatmul.bf16.gmra.mxu0 %v399
        %v485 = vpop.f32.mrf.mxu0
        %v486 = vadd.f32 %v265, %v485
        %v487 = vpop.f32.mrf.mxu0
        %v488 = vadd.f32 %v265, %v487
        %489 = vmatmul.bf16.gmra.mxu0 %v402
        %v490 = vpop.f32.mrf.mxu0
        %v491 = vadd.f32 %v265, %v490
        %v492 = vpop.f32.mrf.mxu0
        %v493 = vadd.f32 %v265, %v492
        %494 = vmatmul.bf16.gmra.mxu0 %v405
        %v495 = vpop.f32.mrf.mxu0
        %v496 = vadd.f32 %v265, %v495
        %v497 = vpop.f32.mrf.mxu0
        %v498 = vadd.f32 %v265, %v497
        %499 = vdwg.mxu0
        %v500 = vmul.f32 %v421, 0.5
        %v501 = vmul.f32 %v423, 0.5
        %v502 = vmul.f32 %v426, 0.5
        %v503 = vmul.f32 %v428, 0.5
        %v504 = vmul.f32 %v431, 0.5
        %v505 = vmul.f32 %v433, 0.5
        %v506 = vmul.f32 %v436, 0.5
        %v507 = vmul.f32 %v438, 0.5
        %v508 = vmul.f32 %v441, 0.5
        %v509 = vmul.f32 %v443, 0.5
        %v510 = vmul.f32 %v446, 0.5
        %v511 = vmul.f32 %v448, 0.5
        %v512 = vmul.f32 %v451, 0.5
        %v513 = vmul.f32 %v453, 0.5
        %v514 = vmul.f32 %v456, 0.5
        %v515 = vmul.f32 %v458, 0.5
        %v516 = vmul.f32 %v461, 0.5
        %v517 = vmul.f32 %v463, 0.5
        %v518 = vmul.f32 %v466, 0.5
        %v519 = vmul.f32 %v468, 0.5
        %v520 = vmul.f32 %v471, 0.5
        %v521 = vmul.f32 %v473, 0.5
        %v522 = vmul.f32 %v476, 0.5
        %v523 = vmul.f32 %v478, 0.5
        %v524 = vmul.f32 %v481, 0.5
        %v525 = vmul.f32 %v483, 0.5
        %v526 = vmul.f32 %v486, 0.5
        %v527 = vmul.f32 %v488, 0.5
        %v528 = vmul.f32 %v491, 0.5
        %v529 = vmul.f32 %v493, 0.5
        %v530 = vmul.f32 %v496, 0.5
        %v531 = vmul.f32 %v498, 0.5
        %v532 = vmul.f32 %v421, 0.044715
        %v533 = vmul.f32 %v423, 0.044715
        %v534 = vmul.f32 %v426, 0.044715
        %v535 = vmul.f32 %v428, 0.044715
        %v536 = vmul.f32 %v431, 0.044715
        %v537 = vmul.f32 %v433, 0.044715
        %v538 = vmul.f32 %v436, 0.044715
        %v539 = vmul.f32 %v438, 0.044715
        %v540 = vmul.f32 %v441, 0.044715
        %v541 = vmul.f32 %v443, 0.044715
        %v542 = vmul.f32 %v446, 0.044715
        %v543 = vmul.f32 %v448, 0.044715
        %v544 = vmul.f32 %v451, 0.044715
        %v545 = vmul.f32 %v453, 0.044715
        %v546 = vmul.f32 %v456, 0.044715
        %v547 = vmul.f32 %v458, 0.044715
        %v548 = vmul.f32 %v461, 0.044715
        %v549 = vmul.f32 %v463, 0.044715
        %v550 = vmul.f32 %v466, 0.044715
        %v551 = vmul.f32 %v468, 0.044715
        %v552 = vmul.f32 %v471, 0.044715
        %v553 = vmul.f32 %v473, 0.044715
        %v554 = vmul.f32 %v476, 0.044715
        %v555 = vmul.f32 %v478, 0.044715
        %v556 = vmul.f32 %v481, 0.044715
        %v557 = vmul.f32 %v483, 0.044715
        %v558 = vmul.f32 %v486, 0.044715
        %v559 = vmul.f32 %v488, 0.044715
        %v560 = vmul.f32 %v491, 0.044715
        %v561 = vmul.f32 %v493, 0.044715
        %v562 = vmul.f32 %v496, 0.044715
        %v563 = vmul.f32 %v498, 0.044715
        %v564 = vmul.f32 %v532, %v421
        %v565 = vmul.f32 %v533, %v423
        %v566 = vmul.f32 %v534, %v426
        %v567 = vmul.f32 %v535, %v428
        %v568 = vmul.f32 %v536, %v431
        %v569 = vmul.f32 %v537, %v433
        %v570 = vmul.f32 %v538, %v436
        %v571 = vmul.f32 %v539, %v438
        %v572 = vmul.f32 %v540, %v441
        %v573 = vmul.f32 %v541, %v443
        %v574 = vmul.f32 %v542, %v446
        %v575 = vmul.f32 %v543, %v448
        %v576 = vmul.f32 %v544, %v451
        %v577 = vmul.f32 %v545, %v453
        %v578 = vmul.f32 %v546, %v456
        %v579 = vmul.f32 %v547, %v458
        %v580 = vmul.f32 %v548, %v461
        %v581 = vmul.f32 %v549, %v463
        %v582 = vmul.f32 %v550, %v466
        %v583 = vmul.f32 %v551, %v468
        %v584 = vmul.f32 %v552, %v471
        %v585 = vmul.f32 %v553, %v473
        %v586 = vmul.f32 %v554, %v476
        %v587 = vmul.f32 %v555, %v478
        %v588 = vmul.f32 %v556, %v481
        %v589 = vmul.f32 %v557, %v483
        %v590 = vmul.f32 %v558, %v486
        %v591 = vmul.f32 %v559, %v488
        %v592 = vmul.f32 %v560, %v491
        %v593 = vmul.f32 %v561, %v493
        %v594 = vmul.f32 %v562, %v496
        %v595 = vmul.f32 %v563, %v498
        %v596 = vmul.f32 %v564, %v421
        %v597 = vmul.f32 %v565, %v423
        %v598 = vmul.f32 %v566, %v426
        %v599 = vmul.f32 %v567, %v428
        %v600 = vmul.f32 %v568, %v431
        %v601 = vmul.f32 %v569, %v433
        %v602 = vmul.f32 %v570, %v436
        %v603 = vmul.f32 %v571, %v438
        %v604 = vmul.f32 %v572, %v441
        %v605 = vmul.f32 %v573, %v443
        %v606 = vmul.f32 %v574, %v446
        %v607 = vmul.f32 %v575, %v448
        %v608 = vmul.f32 %v576, %v451
        %v609 = vmul.f32 %v577, %v453
        %v610 = vmul.f32 %v578, %v456
        %v611 = vmul.f32 %v579, %v458
        %v612 = vmul.f32 %v580, %v461
        %v613 = vmul.f32 %v581, %v463
        %v614 = vmul.f32 %v582, %v466
        %v615 = vmul.f32 %v583, %v468
        %v616 = vmul.f32 %v584, %v471
        %v617 = vmul.f32 %v585, %v473
        %v618 = vmul.f32 %v586, %v476
        %v619 = vmul.f32 %v587, %v478
        %v620 = vmul.f32 %v588, %v481
        %v621 = vmul.f32 %v589, %v483
        %v622 = vmul.f32 %v590, %v486
        %v623 = vmul.f32 %v591, %v488
        %v624 = vmul.f32 %v592, %v491
        %v625 = vmul.f32 %v593, %v493
        %v626 = vmul.f32 %v594, %v496
        %v627 = vmul.f32 %v595, %v498
        %v628 = vadd.f32 %v421, %v596
        %v629 = vadd.f32 %v423, %v597
        %v630 = vadd.f32 %v426, %v598
        %v631 = vadd.f32 %v428, %v599
        %v632 = vadd.f32 %v431, %v600
        %v633 = vadd.f32 %v433, %v601
        %v634 = vadd.f32 %v436, %v602
        %v635 = vadd.f32 %v438, %v603
        %v636 = vadd.f32 %v441, %v604
        %v637 = vadd.f32 %v443, %v605
        %v638 = vadd.f32 %v446, %v606
        %v639 = vadd.f32 %v448, %v607
        %v640 = vadd.f32 %v451, %v608
        %v641 = vadd.f32 %v453, %v609
        %v642 = vadd.f32 %v456, %v610
        %v643 = vadd.f32 %v458, %v611
        %v644 = vadd.f32 %v461, %v612
        %v645 = vadd.f32 %v463, %v613
        %v646 = vadd.f32 %v466, %v614
        %v647 = vadd.f32 %v468, %v615
        %v648 = vadd.f32 %v471, %v616
        %v649 = vadd.f32 %v473, %v617
        %v650 = vadd.f32 %v476, %v618
        %v651 = vadd.f32 %v478, %v619
        %v652 = vadd.f32 %v481, %v620
        %v653 = vadd.f32 %v483, %v621
        %v654 = vadd.f32 %v486, %v622
        %v655 = vadd.f32 %v488, %v623
        %v656 = vadd.f32 %v491, %v624
        %v657 = vadd.f32 %v493, %v625
        %v658 = vadd.f32 %v496, %v626
        %v659 = vadd.f32 %v498, %v627
        %v660 = vmul.f32 %v628, 0.7978846
        %v661 = vmul.f32 %v629, 0.7978846
        %v662 = vmul.f32 %v630, 0.7978846
        %v663 = vmul.f32 %v631, 0.7978846
        %v664 = vmul.f32 %v632, 0.7978846
        %v665 = vmul.f32 %v633, 0.7978846
        %v666 = vmul.f32 %v634, 0.7978846
        %v667 = vmul.f32 %v635, 0.7978846
        %v668 = vmul.f32 %v636, 0.7978846
        %v669 = vmul.f32 %v637, 0.7978846
        %v670 = vmul.f32 %v638, 0.7978846
        %v671 = vmul.f32 %v639, 0.7978846
        %v672 = vmul.f32 %v640, 0.7978846
        %v673 = vmul.f32 %v641, 0.7978846
        %v674 = vmul.f32 %v642, 0.7978846
        %v675 = vmul.f32 %v643, 0.7978846
        %v676 = vmul.f32 %v644, 0.7978846
        %v677 = vmul.f32 %v645, 0.7978846
        %v678 = vmul.f32 %v646, 0.7978846
        %v679 = vmul.f32 %v647, 0.7978846
        %v680 = vmul.f32 %v648, 0.7978846
        %v681 = vmul.f32 %v649, 0.7978846
        %v682 = vmul.f32 %v650, 0.7978846
        %v683 = vmul.f32 %v651, 0.7978846
        %v684 = vmul.f32 %v652, 0.7978846
        %v685 = vmul.f32 %v653, 0.7978846
        %v686 = vmul.f32 %v654, 0.7978846
        %v687 = vmul.f32 %v655, 0.7978846
        %v688 = vmul.f32 %v656, 0.7978846
        %v689 = vmul.f32 %v657, 0.7978846
        %v690 = vmul.f32 %v658, 0.7978846
        %v691 = vmul.f32 %v659, 0.7978846
        %v692 = vtanh.pop %v660
        %v693 = vtanh.pop %v661
        %v694 = vtanh.pop %v662
        %v695 = vtanh.pop %v663
        %v696 = vtanh.pop %v664
        %v697 = vtanh.pop %v665
        %v698 = vtanh.pop %v666
        %v699 = vtanh.pop %v667
        %v700 = vtanh.pop %v668
        %v701 = vtanh.pop %v669
        %v702 = vtanh.pop %v670
        %v703 = vtanh.pop %v671
        %v704 = vtanh.pop %v672
        %v705 = vtanh.pop %v673
        %v706 = vtanh.pop %v674
        %v707 = vtanh.pop %v675
        %v708 = vtanh.pop %v676
        %v709 = vtanh.pop %v677
        %v710 = vtanh.pop %v678
        %v711 = vtanh.pop %v679
        %v712 = vtanh.pop %v680
        %v713 = vtanh.pop %v681
        %v714 = vtanh.pop %v682
        %v715 = vtanh.pop %v683
        %v716 = vtanh.pop %v684
        %v717 = vtanh.pop %v685
        %v718 = vtanh.pop %v686
        %v719 = vtanh.pop %v687
        %v720 = vtanh.pop %v688
        %v721 = vtanh.pop %v689
        %v722 = vtanh.pop %v690
        %v723 = vtanh.pop %v691
        %v724 = vadd.f32 %v692, 1.0
        %v725 = vadd.f32 %v693, 1.0
        %v726 = vadd.f32 %v694, 1.0
        %v727 = vadd.f32 %v695, 1.0
        %v728 = vadd.f32 %v696, 1.0
        %v729 = vadd.f32 %v697, 1.0
        %v730 = vadd.f32 %v698, 1.0
        %v731 = vadd.f32 %v699, 1.0
        %v732 = vadd.f32 %v700, 1.0
        %v733 = vadd.f32 %v701, 1.0
        %v734 = vadd.f32 %v702, 1.0
        %v735 = vadd.f32 %v703, 1.0
        %v736 = vadd.f32 %v704, 1.0
        %v737 = vadd.f32 %v705, 1.0
        %v738 = vadd.f32 %v706, 1.0
        %v739 = vadd.f32 %v707, 1.0
        %v740 = vadd.f32 %v708, 1.0
        %v741 = vadd.f32 %v709, 1.0
        %v742 = vadd.f32 %v710, 1.0
        %v743 = vadd.f32 %v711, 1.0
        %v744 = vadd.f32 %v712, 1.0
        %v745 = vadd.f32 %v713, 1.0
        %v746 = vadd.f32 %v714, 1.0
        %v747 = vadd.f32 %v715, 1.0
        %v748 = vadd.f32 %v716, 1.0
        %v749 = vadd.f32 %v717, 1.0
        %v750 = vadd.f32 %v718, 1.0
        %v751 = vadd.f32 %v719, 1.0
        %v752 = vadd.f32 %v720, 1.0
        %v753 = vadd.f32 %v721, 1.0
        %v754 = vadd.f32 %v722, 1.0
        %v755 = vadd.f32 %v723, 1.0
        %v756 = vmul.f32 %v500, %v724
        %v757 = vmul.f32 %v501, %v725
        %v758 = vmul.f32 %v502, %v726
        %v759 = vmul.f32 %v503, %v727
        %v760 = vmul.f32 %v504, %v728
        %v761 = vmul.f32 %v505, %v729
        %v762 = vmul.f32 %v506, %v730
        %v763 = vmul.f32 %v507, %v731
        %v764 = vmul.f32 %v508, %v732
        %v765 = vmul.f32 %v509, %v733
        %v766 = vmul.f32 %v510, %v734
        %v767 = vmul.f32 %v511, %v735
        %v768 = vmul.f32 %v512, %v736
        %v769 = vmul.f32 %v513, %v737
        %v770 = vmul.f32 %v514, %v738
        %v771 = vmul.f32 %v515, %v739
        %v772 = vmul.f32 %v516, %v740
        %v773 = vmul.f32 %v517, %v741
        %v774 = vmul.f32 %v518, %v742
        %v775 = vmul.f32 %v519, %v743
        %v776 = vmul.f32 %v520, %v744
        %v777 = vmul.f32 %v521, %v745
        %v778 = vmul.f32 %v522, %v746
        %v779 = vmul.f32 %v523, %v747
        %v780 = vmul.f32 %v524, %v748
        %v781 = vmul.f32 %v525, %v749
        %v782 = vmul.f32 %v526, %v750
        %v783 = vmul.f32 %v527, %v751
        %v784 = vmul.f32 %v528, %v752
        %v785 = vmul.f32 %v529, %v753
        %v786 = vmul.f32 %v530, %v754
        %v787 = vmul.f32 %v531, %v755
        %v788 = vpack.c.bf16 %v757, %v756
        %v789 = vpack.c.bf16 %v759, %v758
        %v790 = vpack.c.bf16 %v761, %v760
        %v791 = vpack.c.bf16 %v763, %v762
        %v792 = vpack.c.bf16 %v765, %v764
        %v793 = vpack.c.bf16 %v767, %v766
        %v794 = vpack.c.bf16 %v769, %v768
        %v795 = vpack.c.bf16 %v771, %v770
        %v796 = vpack.c.bf16 %v773, %v772
        %v797 = vpack.c.bf16 %v775, %v774
        %v798 = vpack.c.bf16 %v777, %v776
        %v799 = vpack.c.bf16 %v779, %v778
        %v800 = vpack.c.bf16 %v781, %v780
        %v801 = vpack.c.bf16 %v783, %v782
        %v802 = vpack.c.bf16 %v785, %v784
        %v803 = vpack.c.bf16 %v787, %v786
        %v804 = vld [vmem:[%s3] sm:$0xff]
        %v805 = vld [vmem:[%s3 + $0x8] sm:$0xff]
        %v806 = vld [vmem:[%s3 + $0x10] sm:$0xff]
        %v807 = vld [vmem:[%s3 + $0x18] sm:$0xff]
        %v808 = vld [vmem:[%s4] sm:$0x3]
        %v810 = vperm.slane %v808, 0
        %v811 = vperm.slane %v808, 1
        %v818 = vunpack.c.l.b16 %v804
        %v819 = vunpack.c.h.b16 %v804
        %v820 = vunpack.c.l.b16 %v805
        %v821 = vunpack.c.h.b16 %v805
        %v822 = vunpack.c.l.b16 %v806
        %v823 = vunpack.c.h.b16 %v806
        %v824 = vunpack.c.l.b16 %v807
        %v825 = vunpack.c.h.b16 %v807
        %v826 = vpack.c.b16 %v820, %v818
        %v827 = vpack.c.b16 %v821, %v819
        %v828 = vpack.c.b16 %v824, %v822
        %v829 = vpack.c.b16 %v825, %v823
        %vm834 = vcmask 261120
        %v836 = vsel %vm834, %v788, 0
        %v839 = vsel %vm834, %v789, 0
        %v842 = vsel %vm834, %v790, 0
        %v845 = vsel %vm834, %v791, 0
        %v848 = vsel %vm834, %v792, 0
        %v851 = vsel %vm834, %v793, 0
        %v854 = vsel %vm834, %v794, 0
        %v857 = vsel %vm834, %v795, 0
        %v860 = vsel %vm834, %v796, 0
        %v863 = vsel %vm834, %v797, 0
        %v866 = vsel %vm834, %v798, 0
        %v869 = vsel %vm834, %v799, 0
        %v872 = vsel %vm834, %v800, 0
        %v875 = vsel %vm834, %v801, 0
        %v878 = vsel %vm834, %v802, 0
        %v881 = vsel %vm834, %v803, 0
        %883 = vmatpush.bf16.msra.mxu0 0
        %884 = vmatpush.bf16.msra.mxu0 0
        %885 = vmatpush.bf16.msra.mxu0 0
        %886 = vmatpush.bf16.msra.mxu0 0
        %887 = vmatpush.bf16.msra.mxu0 0
        %888 = vmatpush.bf16.msra.mxu0 0
        %889 = vmatpush.bf16.msra.mxu0 %v828
        %890 = vmatpush.bf16.msra.mxu0 %v826
        %891 = vmatmul.bf16.gmra.mxu0 %v836
        %v892 = vpop.f32.mrf.mxu0
        %v893 = vadd.f32 %v810, %v892
        %v894 = vpop.f32.mrf.mxu0
        %v895 = vadd.f32 %v810, %v894
        %896 = vmatmul.bf16.gmra.mxu0 %v839
        %v897 = vpop.f32.mrf.mxu0
        %v898 = vadd.f32 %v810, %v897
        %v899 = vpop.f32.mrf.mxu0
        %v900 = vadd.f32 %v810, %v899
        %901 = vmatmul.bf16.gmra.mxu0 %v842
        %v902 = vpop.f32.mrf.mxu0
        %v903 = vadd.f32 %v810, %v902
        %v904 = vpop.f32.mrf.mxu0
        %v905 = vadd.f32 %v810, %v904
        %906 = vmatmul.bf16.gmra.mxu0 %v845
        %v907 = vpop.f32.mrf.mxu0
        %v908 = vadd.f32 %v810, %v907
        %v909 = vpop.f32.mrf.mxu0
        %v910 = vadd.f32 %v810, %v909
        %911 = vmatmul.bf16.gmra.mxu0 %v848
        %v912 = vpop.f32.mrf.mxu0
        %v913 = vadd.f32 %v810, %v912
        %v914 = vpop.f32.mrf.mxu0
        %v915 = vadd.f32 %v810, %v914
        %916 = vmatmul.bf16.gmra.mxu0 %v851
        %v917 = vpop.f32.mrf.mxu0
        %v918 = vadd.f32 %v810, %v917
        %v919 = vpop.f32.mrf.mxu0
        %v920 = vadd.f32 %v810, %v919
        %921 = vmatmul.bf16.gmra.mxu0 %v854
        %v922 = vpop.f32.mrf.mxu0
        %v923 = vadd.f32 %v810, %v922
        %v924 = vpop.f32.mrf.mxu0
        %v925 = vadd.f32 %v810, %v924
        %926 = vmatmul.bf16.gmra.mxu0 %v857
        %v927 = vpop.f32.mrf.mxu0
        %v928 = vadd.f32 %v810, %v927
        %v929 = vpop.f32.mrf.mxu0
        %v930 = vadd.f32 %v810, %v929
        %931 = vmatmul.bf16.gmra.mxu0 %v860
        %v932 = vpop.f32.mrf.mxu0
        %v933 = vadd.f32 %v810, %v932
        %v934 = vpop.f32.mrf.mxu0
        %v935 = vadd.f32 %v810, %v934
        %936 = vmatmul.bf16.gmra.mxu0 %v863
        %v937 = vpop.f32.mrf.mxu0
        %v938 = vadd.f32 %v810, %v937
        %v939 = vpop.f32.mrf.mxu0
        %v940 = vadd.f32 %v810, %v939
        %941 = vmatmul.bf16.gmra.mxu0 %v866
        %v942 = vpop.f32.mrf.mxu0
        %v943 = vadd.f32 %v810, %v942
        %v944 = vpop.f32.mrf.mxu0
        %v945 = vadd.f32 %v810, %v944
        %946 = vmatmul.bf16.gmra.mxu0 %v869
        %v947 = vpop.f32.mrf.mxu0
        %v948 = vadd.f32 %v810, %v947
        %v949 = vpop.f32.mrf.mxu0
        %v950 = vadd.f32 %v810, %v949
        %951 = vmatmul.bf16.gmra.mxu0 %v872
        %v952 = vpop.f32.mrf.mxu0
        %v953 = vadd.f32 %v810, %v952
        %v954 = vpop.f32.mrf.mxu0
        %v955 = vadd.f32 %v810, %v954
        %956 = vmatmul.bf16.gmra.mxu0 %v875
        %v957 = vpop.f32.mrf.mxu0
        %v958 = vadd.f32 %v810, %v957
        %v959 = vpop.f32.mrf.mxu0
        %v960 = vadd.f32 %v810, %v959
        %961 = vmatmul.bf16.gmra.mxu0 %v878
        %v962 = vpop.f32.mrf.mxu0
        %v963 = vadd.f32 %v810, %v962
        %v964 = vpop.f32.mrf.mxu0
        %v965 = vadd.f32 %v810, %v964
        %966 = vmatmul.bf16.gmra.mxu0 %v881
        %v967 = vpop.f32.mrf.mxu0
        %v968 = vadd.f32 %v810, %v967
        %v969 = vpop.f32.mrf.mxu0
        %v970 = vadd.f32 %v810, %v969
        %971 = vdwg.mxu0
        %972 = vmatpush.bf16.msra.mxu0 0
        %973 = vmatpush.bf16.msra.mxu0 0
        %974 = vmatpush.bf16.msra.mxu0 0
        %975 = vmatpush.bf16.msra.mxu0 0
        %976 = vmatpush.bf16.msra.mxu0 0
        %977 = vmatpush.bf16.msra.mxu0 0
        %978 = vmatpush.bf16.msra.mxu0 %v829
        %979 = vmatpush.bf16.msra.mxu0 %v827
        %980 = vmatmul.bf16.gmra.mxu0 %v836
        %v981 = vpop.f32.mrf.mxu0
        %v982 = vadd.f32 %v811, %v981
        %v983 = vpop.f32.mrf.mxu0
        %v984 = vadd.f32 %v811, %v983
        %985 = vmatmul.bf16.gmra.mxu0 %v839
        %v986 = vpop.f32.mrf.mxu0
        %v987 = vadd.f32 %v811, %v986
        %v988 = vpop.f32.mrf.mxu0
        %v989 = vadd.f32 %v811, %v988
        %990 = vmatmul.bf16.gmra.mxu0 %v842
        %v991 = vpop.f32.mrf.mxu0
        %v992 = vadd.f32 %v811, %v991
        %v993 = vpop.f32.mrf.mxu0
        %v994 = vadd.f32 %v811, %v993
        %995 = vmatmul.bf16.gmra.mxu0 %v845
        %v996 = vpop.f32.mrf.mxu0
        %v997 = vadd.f32 %v811, %v996
        %v998 = vpop.f32.mrf.mxu0
        %v999 = vadd.f32 %v811, %v998
        %1000 = vmatmul.bf16.gmra.mxu0 %v848
        %v1001 = vpop.f32.mrf.mxu0
        %v1002 = vadd.f32 %v811, %v1001
        %v1003 = vpop.f32.mrf.mxu0
        %v1004 = vadd.f32 %v811, %v1003
        %1005 = vmatmul.bf16.gmra.mxu0 %v851
        %v1006 = vpop.f32.mrf.mxu0
        %v1007 = vadd.f32 %v811, %v1006
        %v1008 = vpop.f32.mrf.mxu0
        %v1009 = vadd.f32 %v811, %v1008
        %1010 = vmatmul.bf16.gmra.mxu0 %v854
        %v1011 = vpop.f32.mrf.mxu0
        %v1012 = vadd.f32 %v811, %v1011
        %v1013 = vpop.f32.mrf.mxu0
        %v1014 = vadd.f32 %v811, %v1013
        %1015 = vmatmul.bf16.gmra.mxu0 %v857
        %v1016 = vpop.f32.mrf.mxu0
        %v1017 = vadd.f32 %v811, %v1016
        %v1018 = vpop.f32.mrf.mxu0
        %v1019 = vadd.f32 %v811, %v1018
        %1020 = vmatmul.bf16.gmra.mxu0 %v860
        %v1021 = vpop.f32.mrf.mxu0
        %v1022 = vadd.f32 %v811, %v1021
        %v1023 = vpop.f32.mrf.mxu0
        %v1024 = vadd.f32 %v811, %v1023
        %1025 = vmatmul.bf16.gmra.mxu0 %v863
        %v1026 = vpop.f32.mrf.mxu0
        %v1027 = vadd.f32 %v811, %v1026
        %v1028 = vpop.f32.mrf.mxu0
        %v1029 = vadd.f32 %v811, %v1028
        %1030 = vmatmul.bf16.gmra.mxu0 %v866
        %v1031 = vpop.f32.mrf.mxu0
        %v1032 = vadd.f32 %v811, %v1031
        %v1033 = vpop.f32.mrf.mxu0
        %v1034 = vadd.f32 %v811, %v1033
        %1035 = vmatmul.bf16.gmra.mxu0 %v869
        %v1036 = vpop.f32.mrf.mxu0
        %v1037 = vadd.f32 %v811, %v1036
        %v1038 = vpop.f32.mrf.mxu0
        %v1039 = vadd.f32 %v811, %v1038
        %1040 = vmatmul.bf16.gmra.mxu0 %v872
        %v1041 = vpop.f32.mrf.mxu0
        %v1042 = vadd.f32 %v811, %v1041
        %v1043 = vpop.f32.mrf.mxu0
        %v1044 = vadd.f32 %v811, %v1043
        %1045 = vmatmul.bf16.gmra.mxu0 %v875
        %v1046 = vpop.f32.mrf.mxu0
        %v1047 = vadd.f32 %v811, %v1046
        %v1048 = vpop.f32.mrf.mxu0
        %v1049 = vadd.f32 %v811, %v1048
        %1050 = vmatmul.bf16.gmra.mxu0 %v878
        %v1051 = vpop.f32.mrf.mxu0
        %v1052 = vadd.f32 %v811, %v1051
        %v1053 = vpop.f32.mrf.mxu0
        %v1054 = vadd.f32 %v811, %v1053
        %1055 = vmatmul.bf16.gmra.mxu0 %v881
        %v1056 = vpop.f32.mrf.mxu0
        %v1057 = vadd.f32 %v811, %v1056
        %v1058 = vpop.f32.mrf.mxu0
        %v1059 = vadd.f32 %v811, %v1058
        %1060 = vdwg.mxu0
        %v1061 = vmul.f32 %v893, 0.5
        %v1062 = vmul.f32 %v982, 0.5
        %v1063 = vmul.f32 %v895, 0.5
        %v1064 = vmul.f32 %v984, 0.5
        %v1065 = vmul.f32 %v898, 0.5
        %v1066 = vmul.f32 %v987, 0.5
        %v1067 = vmul.f32 %v900, 0.5
        %v1068 = vmul.f32 %v989, 0.5
        %v1069 = vmul.f32 %v903, 0.5
        %v1070 = vmul.f32 %v992, 0.5
        %v1071 = vmul.f32 %v905, 0.5
        %v1072 = vmul.f32 %v994, 0.5
        %v1073 = vmul.f32 %v908, 0.5
        %v1074 = vmul.f32 %v997, 0.5
        %v1075 = vmul.f32 %v910, 0.5
        %v1076 = vmul.f32 %v999, 0.5
        %v1077 = vmul.f32 %v913, 0.5
        %v1078 = vmul.f32 %v1002, 0.5
        %v1079 = vmul.f32 %v915, 0.5
        %v1080 = vmul.f32 %v1004, 0.5
        %v1081 = vmul.f32 %v918, 0.5
        %v1082 = vmul.f32 %v1007, 0.5
        %v1083 = vmul.f32 %v920, 0.5
        %v1084 = vmul.f32 %v1009, 0.5
        %v1085 = vmul.f32 %v923, 0.5
        %v1086 = vmul.f32 %v1012, 0.5
        %v1087 = vmul.f32 %v925, 0.5
        %v1088 = vmul.f32 %v1014, 0.5
        %v1089 = vmul.f32 %v928, 0.5
        %v1090 = vmul.f32 %v1017, 0.5
        %v1091 = vmul.f32 %v930, 0.5
        %v1092 = vmul.f32 %v1019, 0.5
        %v1093 = vmul.f32 %v933, 0.5
        %v1094 = vmul.f32 %v1022, 0.5
        %v1095 = vmul.f32 %v935, 0.5
        %v1096 = vmul.f32 %v1024, 0.5
        %v1097 = vmul.f32 %v938, 0.5
        %v1098 = vmul.f32 %v1027, 0.5
        %v1099 = vmul.f32 %v940, 0.5
        %v1100 = vmul.f32 %v1029, 0.5
        %v1101 = vmul.f32 %v943, 0.5
        %v1102 = vmul.f32 %v1032, 0.5
        %v1103 = vmul.f32 %v945, 0.5
        %v1104 = vmul.f32 %v1034, 0.5
        %v1105 = vmul.f32 %v948, 0.5
        %v1106 = vmul.f32 %v1037, 0.5
        %v1107 = vmul.f32 %v950, 0.5
        %v1108 = vmul.f32 %v1039, 0.5
        %v1109 = vmul.f32 %v953, 0.5
        %v1110 = vmul.f32 %v1042, 0.5
        %v1111 = vmul.f32 %v955, 0.5
        %v1112 = vmul.f32 %v1044, 0.5
        %v1113 = vmul.f32 %v958, 0.5
        %v1114 = vmul.f32 %v1047, 0.5
        %v1115 = vmul.f32 %v960, 0.5
        %v1116 = vmul.f32 %v1049, 0.5
        %v1117 = vmul.f32 %v963, 0.5
        %v1118 = vmul.f32 %v1052, 0.5
        %v1119 = vmul.f32 %v965, 0.5
        %v1120 = vmul.f32 %v1054, 0.5
        %v1121 = vmul.f32 %v968, 0.5
        %v1122 = vmul.f32 %v1057, 0.5
        %v1123 = vmul.f32 %v970, 0.5
        %v1124 = vmul.f32 %v1059, 0.5
        %v1125 = vmul.f32 %v893, 0.044715
        %v1126 = vmul.f32 %v982, 0.044715
        %v1127 = vmul.f32 %v895, 0.044715
        %v1128 = vmul.f32 %v984, 0.044715
        %v1129 = vmul.f32 %v898, 0.044715
        %v1130 = vmul.f32 %v987, 0.044715
        %v1131 = vmul.f32 %v900, 0.044715
        %v1132 = vmul.f32 %v989, 0.044715
        %v1133 = vmul.f32 %v903, 0.044715
        %v1134 = vmul.f32 %v992, 0.044715
        %v1135 = vmul.f32 %v905, 0.044715
        %v1136 = vmul.f32 %v994, 0.044715
        %v1137 = vmul.f32 %v908, 0.044715
        %v1138 = vmul.f32 %v997, 0.044715
        %v1139 = vmul.f32 %v910, 0.044715
        %v1140 = vmul.f32 %v999, 0.044715
        %v1141 = vmul.f32 %v913, 0.044715
        %v1142 = vmul.f32 %v1002, 0.044715
        %v1143 = vmul.f32 %v915, 0.044715
        %v1144 = vmul.f32 %v1004, 0.044715
        %v1145 = vmul.f32 %v918, 0.044715
        %v1146 = vmul.f32 %v1007, 0.044715
        %v1147 = vmul.f32 %v920, 0.044715
        %v1148 = vmul.f32 %v1009, 0.044715
        %v1149 = vmul.f32 %v923, 0.044715
        %v1150 = vmul.f32 %v1012, 0.044715
        %v1151 = vmul.f32 %v925, 0.044715
        %v1152 = vmul.f32 %v1014, 0.044715
        %v1153 = vmul.f32 %v928, 0.044715
        %v1154 = vmul.f32 %v1017, 0.044715
        %v1155 = vmul.f32 %v930, 0.044715
        %v1156 = vmul.f32 %v1019, 0.044715
        %v1157 = vmul.f32 %v933, 0.044715
        %v1158 = vmul.f32 %v1022, 0.044715
        %v1159 = vmul.f32 %v935, 0.044715
        %v1160 = vmul.f32 %v1024, 0.044715
        %v1161 = vmul.f32 %v938, 0.044715
        %v1162 = vmul.f32 %v1027, 0.044715
        %v1163 = vmul.f32 %v940, 0.044715
        %v1164 = vmul.f32 %v1029, 0.044715
        %v1165 = vmul.f32 %v943, 0.044715
        %v1166 = vmul.f32 %v1032, 0.044715
        %v1167 = vmul.f32 %v945, 0.044715
        %v1168 = vmul.f32 %v1034, 0.044715
        %v1169 = vmul.f32 %v948, 0.044715
        %v1170 = vmul.f32 %v1037, 0.044715
        %v1171 = vmul.f32 %v950, 0.044715
        %v1172 = vmul.f32 %v1039, 0.044715
        %v1173 = vmul.f32 %v953, 0.044715
        %v1174 = vmul.f32 %v1042, 0.044715
        %v1175 = vmul.f32 %v955, 0.044715
        %v1176 = vmul.f32 %v1044, 0.044715
        %v1177 = vmul.f32 %v958, 0.044715
        %v1178 = vmul.f32 %v1047, 0.044715
        %v1179 = vmul.f32 %v960, 0.044715
        %v1180 = vmul.f32 %v1049, 0.044715
        %v1181 = vmul.f32 %v963, 0.044715
        %v1182 = vmul.f32 %v1052, 0.044715
        %v1183 = vmul.f32 %v965, 0.044715
        %v1184 = vmul.f32 %v1054, 0.044715
        %v1185 = vmul.f32 %v968, 0.044715
        %v1186 = vmul.f32 %v1057, 0.044715
        %v1187 = vmul.f32 %v970, 0.044715
        %v1188 = vmul.f32 %v1059, 0.044715
        %v1189 = vmul.f32 %v1125, %v893
        %v1190 = vmul.f32 %v1126, %v982
        %v1191 = vmul.f32 %v1127, %v895
        %v1192 = vmul.f32 %v1128, %v984
        %v1193 = vmul.f32 %v1129, %v898
        %v1194 = vmul.f32 %v1130, %v987
        %v1195 = vmul.f32 %v1131, %v900
        %v1196 = vmul.f32 %v1132, %v989
        %v1197 = vmul.f32 %v1133, %v903
        %v1198 = vmul.f32 %v1134, %v992
        %v1199 = vmul.f32 %v1135, %v905
        %v1200 = vmul.f32 %v1136, %v994
        %v1201 = vmul.f32 %v1137, %v908
        %v1202 = vmul.f32 %v1138, %v997
        %v1203 = vmul.f32 %v1139, %v910
        %v1204 = vmul.f32 %v1140, %v999
        %v1205 = vmul.f32 %v1141, %v913
        %v1206 = vmul.f32 %v1142, %v1002
        %v1207 = vmul.f32 %v1143, %v915
        %v1208 = vmul.f32 %v1144, %v1004
        %v1209 = vmul.f32 %v1145, %v918
        %v1210 = vmul.f32 %v1146, %v1007
        %v1211 = vmul.f32 %v1147, %v920
        %v1212 = vmul.f32 %v1148, %v1009
        %v1213 = vmul.f32 %v1149, %v923
        %v1214 = vmul.f32 %v1150, %v1012
        %v1215 = vmul.f32 %v1151, %v925
        %v1216 = vmul.f32 %v1152, %v1014
        %v1217 = vmul.f32 %v1153, %v928
        %v1218 = vmul.f32 %v1154, %v1017
        %v1219 = vmul.f32 %v1155, %v930
        %v1220 = vmul.f32 %v1156, %v1019
        %v1221 = vmul.f32 %v1157, %v933
        %v1222 = vmul.f32 %v1158, %v1022
        %v1223 = vmul.f32 %v1159, %v935
        %v1224 = vmul.f32 %v1160, %v1024
        %v1225 = vmul.f32 %v1161, %v938
        %v1226 = vmul.f32 %v1162, %v1027
        %v1227 = vmul.f32 %v1163, %v940
        %v1228 = vmul.f32 %v1164, %v1029
        %v1229 = vmul.f32 %v1165, %v943
        %v1230 = vmul.f32 %v1166, %v1032
        %v1231 = vmul.f32 %v1167, %v945
        %v1232 = vmul.f32 %v1168, %v1034
        %v1233 = vmul.f32 %v1169, %v948
        %v1234 = vmul.f32 %v1170, %v1037
        %v1235 = vmul.f32 %v1171, %v950
        %v1236 = vmul.f32 %v1172, %v1039
        %v1237 = vmul.f32 %v1173, %v953
        %v1238 = vmul.f32 %v1174, %v1042
        %v1239 = vmul.f32 %v1175, %v955
        %v1240 = vmul.f32 %v1176, %v1044
        %v1241 = vmul.f32 %v1177, %v958
        %v1242 = vmul.f32 %v1178, %v1047
        %v1243 = vmul.f32 %v1179, %v960
        %v1244 = vmul.f32 %v1180, %v1049
        %v1245 = vmul.f32 %v1181, %v963
        %v1246 = vmul.f32 %v1182, %v1052
        %v1247 = vmul.f32 %v1183, %v965
        %v1248 = vmul.f32 %v1184, %v1054
        %v1249 = vmul.f32 %v1185, %v968
        %v1250 = vmul.f32 %v1186, %v1057
        %v1251 = vmul.f32 %v1187, %v970
        %v1252 = vmul.f32 %v1188, %v1059
        %v1253 = vmul.f32 %v1189, %v893
        %v1254 = vmul.f32 %v1190, %v982
        %v1255 = vmul.f32 %v1191, %v895
        %v1256 = vmul.f32 %v1192, %v984
        %v1257 = vmul.f32 %v1193, %v898
        %v1258 = vmul.f32 %v1194, %v987
        %v1259 = vmul.f32 %v1195, %v900
        %v1260 = vmul.f32 %v1196, %v989
        %v1261 = vmul.f32 %v1197, %v903
        %v1262 = vmul.f32 %v1198, %v992
        %v1263 = vmul.f32 %v1199, %v905
        %v1264 = vmul.f32 %v1200, %v994
        %v1265 = vmul.f32 %v1201, %v908
        %v1266 = vmul.f32 %v1202, %v997
        %v1267 = vmul.f32 %v1203, %v910
        %v1268 = vmul.f32 %v1204, %v999
        %v1269 = vmul.f32 %v1205, %v913
        %v1270 = vmul.f32 %v1206, %v1002
        %v1271 = vmul.f32 %v1207, %v915
        %v1272 = vmul.f32 %v1208, %v1004
        %v1273 = vmul.f32 %v1209, %v918
        %v1274 = vmul.f32 %v1210, %v1007
        %v1275 = vmul.f32 %v1211, %v920
        %v1276 = vmul.f32 %v1212, %v1009
        %v1277 = vmul.f32 %v1213, %v923
        %v1278 = vmul.f32 %v1214, %v1012
        %v1279 = vmul.f32 %v1215, %v925
        %v1280 = vmul.f32 %v1216, %v1014
        %v1281 = vmul.f32 %v1217, %v928
        %v1282 = vmul.f32 %v1218, %v1017
        %v1283 = vmul.f32 %v1219, %v930
        %v1284 = vmul.f32 %v1220, %v1019
        %v1285 = vmul.f32 %v1221, %v933
        %v1286 = vmul.f32 %v1222, %v1022
        %v1287 = vmul.f32 %v1223, %v935
        %v1288 = vmul.f32 %v1224, %v1024
        %v1289 = vmul.f32 %v1225, %v938
        %v1290 = vmul.f32 %v1226, %v1027
        %v1291 = vmul.f32 %v1227, %v940
        %v1292 = vmul.f32 %v1228, %v1029
        %v1293 = vmul.f32 %v1229, %v943
        %v1294 = vmul.f32 %v1230, %v1032
        %v1295 = vmul.f32 %v1231, %v945
        %v1296 = vmul.f32 %v1232, %v1034
        %v1297 = vmul.f32 %v1233, %v948
        %v1298 = vmul.f32 %v1234, %v1037
        %v1299 = vmul.f32 %v1235, %v950
        %v1300 = vmul.f32 %v1236, %v1039
        %v1301 = vmul.f32 %v1237, %v953
        %v1302 = vmul.f32 %v1238, %v1042
        %v1303 = vmul.f32 %v1239, %v955
        %v1304 = vmul.f32 %v1240, %v1044
        %v1305 = vmul.f32 %v1241, %v958
        %v1306 = vmul.f32 %v1242, %v1047
        %v1307 = vmul.f32 %v1243, %v960
        %v1308 = vmul.f32 %v1244, %v1049
        %v1309 = vmul.f32 %v1245, %v963
        %v1310 = vmul.f32 %v1246, %v1052
        %v1311 = vmul.f32 %v1247, %v965
        %v1312 = vmul.f32 %v1248, %v1054
        %v1313 = vmul.f32 %v1249, %v968
        %v1314 = vmul.f32 %v1250, %v1057
        %v1315 = vmul.f32 %v1251, %v970
        %v1316 = vmul.f32 %v1252, %v1059
        %v1317 = vadd.f32 %v893, %v1253
        %v1318 = vadd.f32 %v982, %v1254
        %v1319 = vadd.f32 %v895, %v1255
        %v1320 = vadd.f32 %v984, %v1256
        %v1321 = vadd.f32 %v898, %v1257
        %v1322 = vadd.f32 %v987, %v1258
        %v1323 = vadd.f32 %v900, %v1259
        %v1324 = vadd.f32 %v989, %v1260
        %v1325 = vadd.f32 %v903, %v1261
        %v1326 = vadd.f32 %v992, %v1262
        %v1327 = vadd.f32 %v905, %v1263
        %v1328 = vadd.f32 %v994, %v1264
        %v1329 = vadd.f32 %v908, %v1265
        %v1330 = vadd.f32 %v997, %v1266
        %v1331 = vadd.f32 %v910, %v1267
        %v1332 = vadd.f32 %v999, %v1268
        %v1333 = vadd.f32 %v913, %v1269
        %v1334 = vadd.f32 %v1002, %v1270
        %v1335 = vadd.f32 %v915, %v1271
        %v1336 = vadd.f32 %v1004, %v1272
        %v1337 = vadd.f32 %v918, %v1273
        %v1338 = vadd.f32 %v1007, %v1274
        %v1339 = vadd.f32 %v920, %v1275
        %v1340 = vadd.f32 %v1009, %v1276
        %v1341 = vadd.f32 %v923, %v1277
        %v1342 = vadd.f32 %v1012, %v1278
        %v1343 = vadd.f32 %v925, %v1279
        %v1344 = vadd.f32 %v1014, %v1280
        %v1345 = vadd.f32 %v928, %v1281
        %v1346 = vadd.f32 %v1017, %v1282
        %v1347 = vadd.f32 %v930, %v1283
        %v1348 = vadd.f32 %v1019, %v1284
        %v1349 = vadd.f32 %v933, %v1285
        %v1350 = vadd.f32 %v1022, %v1286
        %v1351 = vadd.f32 %v935, %v1287
        %v1352 = vadd.f32 %v1024, %v1288
        %v1353 = vadd.f32 %v938, %v1289
        %v1354 = vadd.f32 %v1027, %v1290
        %v1355 = vadd.f32 %v940, %v1291
        %v1356 = vadd.f32 %v1029, %v1292
        %v1357 = vadd.f32 %v943, %v1293
        %v1358 = vadd.f32 %v1032, %v1294
        %v1359 = vadd.f32 %v945, %v1295
        %v1360 = vadd.f32 %v1034, %v1296
        %v1361 = vadd.f32 %v948, %v1297
        %v1362 = vadd.f32 %v1037, %v1298
        %v1363 = vadd.f32 %v950, %v1299
        %v1364 = vadd.f32 %v1039, %v1300
        %v1365 = vadd.f32 %v953, %v1301
        %v1366 = vadd.f32 %v1042, %v1302
        %v1367 = vadd.f32 %v955, %v1303
        %v1368 = vadd.f32 %v1044, %v1304
        %v1369 = vadd.f32 %v958, %v1305
        %v1370 = vadd.f32 %v1047, %v1306
        %v1371 = vadd.f32 %v960, %v1307
        %v1372 = vadd.f32 %v1049, %v1308
        %v1373 = vadd.f32 %v963, %v1309
        %v1374 = vadd.f32 %v1052, %v1310
        %v1375 = vadd.f32 %v965, %v1311
        %v1376 = vadd.f32 %v1054, %v1312
        %v1377 = vadd.f32 %v968, %v1313
        %v1378 = vadd.f32 %v1057, %v1314
        %v1379 = vadd.f32 %v970, %v1315
        %v1380 = vadd.f32 %v1059, %v1316
        %v1381 = vmul.f32 %v1317, 0.7978846
        %v1382 = vmul.f32 %v1318, 0.7978846
        %v1383 = vmul.f32 %v1319, 0.7978846
        %v1384 = vmul.f32 %v1320, 0.7978846
        %v1385 = vmul.f32 %v1321, 0.7978846
        %v1386 = vmul.f32 %v1322, 0.7978846
        %v1387 = vmul.f32 %v1323, 0.7978846
        %v1388 = vmul.f32 %v1324, 0.7978846
        %v1389 = vmul.f32 %v1325, 0.7978846
        %v1390 = vmul.f32 %v1326, 0.7978846
        %v1391 = vmul.f32 %v1327, 0.7978846
        %v1392 = vmul.f32 %v1328, 0.7978846
        %v1393 = vmul.f32 %v1329, 0.7978846
        %v1394 = vmul.f32 %v1330, 0.7978846
        %v1395 = vmul.f32 %v1331, 0.7978846
        %v1396 = vmul.f32 %v1332, 0.7978846
        %v1397 = vmul.f32 %v1333, 0.7978846
        %v1398 = vmul.f32 %v1334, 0.7978846
        %v1399 = vmul.f32 %v1335, 0.7978846
        %v1400 = vmul.f32 %v1336, 0.7978846
        %v1401 = vmul.f32 %v1337, 0.7978846
        %v1402 = vmul.f32 %v1338, 0.7978846
        %v1403 = vmul.f32 %v1339, 0.7978846
        %v1404 = vmul.f32 %v1340, 0.7978846
        %v1405 = vmul.f32 %v1341, 0.7978846
        %v1406 = vmul.f32 %v1342, 0.7978846
        %v1407 = vmul.f32 %v1343, 0.7978846
        %v1408 = vmul.f32 %v1344, 0.7978846
        %v1409 = vmul.f32 %v1345, 0.7978846
        %v1410 = vmul.f32 %v1346, 0.7978846
        %v1411 = vmul.f32 %v1347, 0.7978846
        %v1412 = vmul.f32 %v1348, 0.7978846
        %v1413 = vmul.f32 %v1349, 0.7978846
        %v1414 = vmul.f32 %v1350, 0.7978846
        %v1415 = vmul.f32 %v1351, 0.7978846
        %v1416 = vmul.f32 %v1352, 0.7978846
        %v1417 = vmul.f32 %v1353, 0.7978846
        %v1418 = vmul.f32 %v1354, 0.7978846
        %v1419 = vmul.f32 %v1355, 0.7978846
        %v1420 = vmul.f32 %v1356, 0.7978846
        %v1421 = vmul.f32 %v1357, 0.7978846
        %v1422 = vmul.f32 %v1358, 0.7978846
        %v1423 = vmul.f32 %v1359, 0.7978846
        %v1424 = vmul.f32 %v1360, 0.7978846
        %v1425 = vmul.f32 %v1361, 0.7978846
        %v1426 = vmul.f32 %v1362, 0.7978846
        %v1427 = vmul.f32 %v1363, 0.7978846
        %v1428 = vmul.f32 %v1364, 0.7978846
        %v1429 = vmul.f32 %v1365, 0.7978846
        %v1430 = vmul.f32 %v1366, 0.7978846
        %v1431 = vmul.f32 %v1367, 0.7978846
        %v1432 = vmul.f32 %v1368, 0.7978846
        %v1433 = vmul.f32 %v1369, 0.7978846
        %v1434 = vmul.f32 %v1370, 0.7978846
        %v1435 = vmul.f32 %v1371, 0.7978846
        %v1436 = vmul.f32 %v1372, 0.7978846
        %v1437 = vmul.f32 %v1373, 0.7978846
        %v1438 = vmul.f32 %v1374, 0.7978846
        %v1439 = vmul.f32 %v1375, 0.7978846
        %v1440 = vmul.f32 %v1376, 0.7978846
        %v1441 = vmul.f32 %v1377, 0.7978846
        %v1442 = vmul.f32 %v1378, 0.7978846
        %v1443 = vmul.f32 %v1379, 0.7978846
        %v1444 = vmul.f32 %v1380, 0.7978846
        %v1445 = vtanh.pop %v1381
        %v1446 = vtanh.pop %v1382
        %v1447 = vtanh.pop %v1383
        %v1448 = vtanh.pop %v1384
        %v1449 = vtanh.pop %v1385
        %v1450 = vtanh.pop %v1386
        %v1451 = vtanh.pop %v1387
        %v1452 = vtanh.pop %v1388
        %v1453 = vtanh.pop %v1389
        %v1454 = vtanh.pop %v1390
        %v1455 = vtanh.pop %v1391
        %v1456 = vtanh.pop %v1392
        %v1457 = vtanh.pop %v1393
        %v1458 = vtanh.pop %v1394
        %v1459 = vtanh.pop %v1395
        %v1460 = vtanh.pop %v1396
        %v1461 = vtanh.pop %v1397
        %v1462 = vtanh.pop %v1398
        %v1463 = vtanh.pop %v1399
        %v1464 = vtanh.pop %v1400
        %v1465 = vtanh.pop %v1401
        %v1466 = vtanh.pop %v1402
        %v1467 = vtanh.pop %v1403
        %v1468 = vtanh.pop %v1404
        %v1469 = vtanh.pop %v1405
        %v1470 = vtanh.pop %v1406
        %v1471 = vtanh.pop %v1407
        %v1472 = vtanh.pop %v1408
        %v1473 = vtanh.pop %v1409
        %v1474 = vtanh.pop %v1410
        %v1475 = vtanh.pop %v1411
        %v1476 = vtanh.pop %v1412
        %v1477 = vtanh.pop %v1413
        %v1478 = vtanh.pop %v1414
        %v1479 = vtanh.pop %v1415
        %v1480 = vtanh.pop %v1416
        %v1481 = vtanh.pop %v1417
        %v1482 = vtanh.pop %v1418
        %v1483 = vtanh.pop %v1419
        %v1484 = vtanh.pop %v1420
        %v1485 = vtanh.pop %v1421
        %v1486 = vtanh.pop %v1422
        %v1487 = vtanh.pop %v1423
        %v1488 = vtanh.pop %v1424
        %v1489 = vtanh.pop %v1425
        %v1490 = vtanh.pop %v1426
        %v1491 = vtanh.pop %v1427
        %v1492 = vtanh.pop %v1428
        %v1493 = vtanh.pop %v1429
        %v1494 = vtanh.pop %v1430
        %v1495 = vtanh.pop %v1431
        %v1496 = vtanh.pop %v1432
        %v1497 = vtanh.pop %v1433
        %v1498 = vtanh.pop %v1434
        %v1499 = vtanh.pop %v1435
        %v1500 = vtanh.pop %v1436
        %v1501 = vtanh.pop %v1437
        %v1502 = vtanh.pop %v1438
        %v1503 = vtanh.pop %v1439
        %v1504 = vtanh.pop %v1440
        %v1505 = vtanh.pop %v1441
        %v1506 = vtanh.pop %v1442
        %v1507 = vtanh.pop %v1443
        %v1508 = vtanh.pop %v1444
        %v1509 = vadd.f32 %v1445, 1.0
        %v1510 = vadd.f32 %v1446, 1.0
        %v1511 = vadd.f32 %v1447, 1.0
        %v1512 = vadd.f32 %v1448, 1.0
        %v1513 = vadd.f32 %v1449, 1.0
        %v1514 = vadd.f32 %v1450, 1.0
        %v1515 = vadd.f32 %v1451, 1.0
        %v1516 = vadd.f32 %v1452, 1.0
        %v1517 = vadd.f32 %v1453, 1.0
        %v1518 = vadd.f32 %v1454, 1.0
        %v1519 = vadd.f32 %v1455, 1.0
        %v1520 = vadd.f32 %v1456, 1.0
        %v1521 = vadd.f32 %v1457, 1.0
        %v1522 = vadd.f32 %v1458, 1.0
        %v1523 = vadd.f32 %v1459, 1.0
        %v1524 = vadd.f32 %v1460, 1.0
        %v1525 = vadd.f32 %v1461, 1.0
        %v1526 = vadd.f32 %v1462, 1.0
        %v1527 = vadd.f32 %v1463, 1.0
        %v1528 = vadd.f32 %v1464, 1.0
        %v1529 = vadd.f32 %v1465, 1.0
        %v1530 = vadd.f32 %v1466, 1.0
        %v1531 = vadd.f32 %v1467, 1.0
        %v1532 = vadd.f32 %v1468, 1.0
        %v1533 = vadd.f32 %v1469, 1.0
        %v1534 = vadd.f32 %v1470, 1.0
        %v1535 = vadd.f32 %v1471, 1.0
        %v1536 = vadd.f32 %v1472, 1.0
        %v1537 = vadd.f32 %v1473, 1.0
        %v1538 = vadd.f32 %v1474, 1.0
        %v1539 = vadd.f32 %v1475, 1.0
        %v1540 = vadd.f32 %v1476, 1.0
        %v1541 = vadd.f32 %v1477, 1.0
        %v1542 = vadd.f32 %v1478, 1.0
        %v1543 = vadd.f32 %v1479, 1.0
        %v1544 = vadd.f32 %v1480, 1.0
        %v1545 = vadd.f32 %v1481, 1.0
        %v1546 = vadd.f32 %v1482, 1.0
        %v1547 = vadd.f32 %v1483, 1.0
        %v1548 = vadd.f32 %v1484, 1.0
        %v1549 = vadd.f32 %v1485, 1.0
        %v1550 = vadd.f32 %v1486, 1.0
        %v1551 = vadd.f32 %v1487, 1.0
        %v1552 = vadd.f32 %v1488, 1.0
        %v1553 = vadd.f32 %v1489, 1.0
        %v1554 = vadd.f32 %v1490, 1.0
        %v1555 = vadd.f32 %v1491, 1.0
        %v1556 = vadd.f32 %v1492, 1.0
        %v1557 = vadd.f32 %v1493, 1.0
        %v1558 = vadd.f32 %v1494, 1.0
        %v1559 = vadd.f32 %v1495, 1.0
        %v1560 = vadd.f32 %v1496, 1.0
        %v1561 = vadd.f32 %v1497, 1.0
        %v1562 = vadd.f32 %v1498, 1.0
        %v1563 = vadd.f32 %v1499, 1.0
        %v1564 = vadd.f32 %v1500, 1.0
        %v1565 = vadd.f32 %v1501, 1.0
        %v1566 = vadd.f32 %v1502, 1.0
        %v1567 = vadd.f32 %v1503, 1.0
        %v1568 = vadd.f32 %v1504, 1.0
        %v1569 = vadd.f32 %v1505, 1.0
        %v1570 = vadd.f32 %v1506, 1.0
        %v1571 = vadd.f32 %v1507, 1.0
        %v1572 = vadd.f32 %v1508, 1.0
        %v1573 = vmul.f32 %v1061, %v1509
        %v1574 = vmul.f32 %v1062, %v1510
        %v1575 = vmul.f32 %v1063, %v1511
        %v1576 = vmul.f32 %v1064, %v1512
        %v1577 = vmul.f32 %v1065, %v1513
        %v1578 = vmul.f32 %v1066, %v1514
        %v1579 = vmul.f32 %v1067, %v1515
        %v1580 = vmul.f32 %v1068, %v1516
        %v1581 = vmul.f32 %v1069, %v1517
        %v1582 = vmul.f32 %v1070, %v1518
        %v1583 = vmul.f32 %v1071, %v1519
        %v1584 = vmul.f32 %v1072, %v1520
        %v1585 = vmul.f32 %v1073, %v1521
        %v1586 = vmul.f32 %v1074, %v1522
        %v1587 = vmul.f32 %v1075, %v1523
        %v1588 = vmul.f32 %v1076, %v1524
        %v1589 = vmul.f32 %v1077, %v1525
        %v1590 = vmul.f32 %v1078, %v1526
        %v1591 = vmul.f32 %v1079, %v1527
        %v1592 = vmul.f32 %v1080, %v1528
        %v1593 = vmul.f32 %v1081, %v1529
        %v1594 = vmul.f32 %v1082, %v1530
        %v1595 = vmul.f32 %v1083, %v1531
        %v1596 = vmul.f32 %v1084, %v1532
        %v1597 = vmul.f32 %v1085, %v1533
        %v1598 = vmul.f32 %v1086, %v1534
        %v1599 = vmul.f32 %v1087, %v1535
        %v1600 = vmul.f32 %v1088, %v1536
        %v1601 = vmul.f32 %v1089, %v1537
        %v1602 = vmul.f32 %v1090, %v1538
        %v1603 = vmul.f32 %v1091, %v1539
        %v1604 = vmul.f32 %v1092, %v1540
        %v1605 = vmul.f32 %v1093, %v1541
        %v1606 = vmul.f32 %v1094, %v1542
        %v1607 = vmul.f32 %v1095, %v1543
        %v1608 = vmul.f32 %v1096, %v1544
        %v1609 = vmul.f32 %v1097, %v1545
        %v1610 = vmul.f32 %v1098, %v1546
        %v1611 = vmul.f32 %v1099, %v1547
        %v1612 = vmul.f32 %v1100, %v1548
        %v1613 = vmul.f32 %v1101, %v1549
        %v1614 = vmul.f32 %v1102, %v1550
        %v1615 = vmul.f32 %v1103, %v1551
        %v1616 = vmul.f32 %v1104, %v1552
        %v1617 = vmul.f32 %v1105, %v1553
        %v1618 = vmul.f32 %v1106, %v1554
        %v1619 = vmul.f32 %v1107, %v1555
        %v1620 = vmul.f32 %v1108, %v1556
        %v1621 = vmul.f32 %v1109, %v1557
        %v1622 = vmul.f32 %v1110, %v1558
        %v1623 = vmul.f32 %v1111, %v1559
        %v1624 = vmul.f32 %v1112, %v1560
        %v1625 = vmul.f32 %v1113, %v1561
        %v1626 = vmul.f32 %v1114, %v1562
        %v1627 = vmul.f32 %v1115, %v1563
        %v1628 = vmul.f32 %v1116, %v1564
        %v1629 = vmul.f32 %v1117, %v1565
        %v1630 = vmul.f32 %v1118, %v1566
        %v1631 = vmul.f32 %v1119, %v1567
        %v1632 = vmul.f32 %v1120, %v1568
        %v1633 = vmul.f32 %v1121, %v1569
        %v1634 = vmul.f32 %v1122, %v1570
        %v1635 = vmul.f32 %v1123, %v1571
        %v1636 = vmul.f32 %v1124, %v1572
        %1637 = vst [vmem:[%s218] sm:$0xff] %v1573
        %1638 = vst [vmem:[%s218 + $0x8] sm:$0xff] %v1574
        %1639 = vst [vmem:[%s218 + $0x10] sm:$0xff] %v1575
        %1640 = vst [vmem:[%s218 + $0x18] sm:$0xff] %v1576
        %1641 = vst [vmem:[%s218 + $0x20] sm:$0xff] %v1577
        %1642 = vst [vmem:[%s218 + $0x28] sm:$0xff] %v1578
        %1643 = vst [vmem:[%s218 + $0x30] sm:$0xff] %v1579
        %1644 = vst [vmem:[%s218 + $0x38] sm:$0xff] %v1580
        %1645 = vst [vmem:[%s218 + $0x40] sm:$0xff] %v1581
        %1646 = vst [vmem:[%s218 + $0x48] sm:$0xff] %v1582
        %1647 = vst [vmem:[%s218 + $0x50] sm:$0xff] %v1583
        %1648 = vst [vmem:[%s218 + $0x58] sm:$0xff] %v1584
        %1649 = vst [vmem:[%s218 + $0x60] sm:$0xff] %v1585
        %1650 = vst [vmem:[%s218 + $0x68] sm:$0xff] %v1586
        %1651 = vst [vmem:[%s218 + $0x70] sm:$0xff] %v1587
        %1652 = vst [vmem:[%s218 + $0x78] sm:$0xff] %v1588
        %1653 = vst [vmem:[%s218 + $0x80] sm:$0xff] %v1589
        %1654 = vst [vmem:[%s218 + $0x88] sm:$0xff] %v1590
        %1655 = vst [vmem:[%s218 + $0x90] sm:$0xff] %v1591
        %1656 = vst [vmem:[%s218 + $0x98] sm:$0xff] %v1592
        %1657 = vst [vmem:[%s218 + $0xa0] sm:$0xff] %v1593
        %1658 = vst [vmem:[%s218 + $0xa8] sm:$0xff] %v1594
        %1659 = vst [vmem:[%s218 + $0xb0] sm:$0xff] %v1595
        %1660 = vst [vmem:[%s218 + $0xb8] sm:$0xff] %v1596
        %1661 = vst [vmem:[%s218 + $0xc0] sm:$0xff] %v1597
        %1662 = vst [vmem:[%s218 + $0xc8] sm:$0xff] %v1598
        %1663 = vst [vmem:[%s218 + $0xd0] sm:$0xff] %v1599
        %1664 = vst [vmem:[%s218 + $0xd8] sm:$0xff] %v1600
        %1665 = vst [vmem:[%s218 + $0xe0] sm:$0xff] %v1601
        %1666 = vst [vmem:[%s218 + $0xe8] sm:$0xff] %v1602
        %1667 = vst [vmem:[%s218 + $0xf0] sm:$0xff] %v1603
        %1668 = vst [vmem:[%s218 + $0xf8] sm:$0xff] %v1604
        %1669 = vst [vmem:[%s218 + $0x100] sm:$0xff] %v1605
        %1670 = vst [vmem:[%s218 + $0x108] sm:$0xff] %v1606
        %1671 = vst [vmem:[%s218 + $0x110] sm:$0xff] %v1607
        %1672 = vst [vmem:[%s218 + $0x118] sm:$0xff] %v1608
        %1673 = vst [vmem:[%s218 + $0x120] sm:$0xff] %v1609
        %1674 = vst [vmem:[%s218 + $0x128] sm:$0xff] %v1610
        %1675 = vst [vmem:[%s218 + $0x130] sm:$0xff] %v1611
        %1676 = vst [vmem:[%s218 + $0x138] sm:$0xff] %v1612
        %1677 = vst [vmem:[%s218 + $0x140] sm:$0xff] %v1613
        %1678 = vst [vmem:[%s218 + $0x148] sm:$0xff] %v1614
        %1679 = vst [vmem:[%s218 + $0x150] sm:$0xff] %v1615
        %1680 = vst [vmem:[%s218 + $0x158] sm:$0xff] %v1616
        %1681 = vst [vmem:[%s218 + $0x160] sm:$0xff] %v1617
        %1682 = vst [vmem:[%s218 + $0x168] sm:$0xff] %v1618
        %1683 = vst [vmem:[%s218 + $0x170] sm:$0xff] %v1619
        %1684 = vst [vmem:[%s218 + $0x178] sm:$0xff] %v1620
        %1685 = vst [vmem:[%s218 + $0x180] sm:$0xff] %v1621
        %1686 = vst [vmem:[%s218 + $0x188] sm:$0xff] %v1622
        %1687 = vst [vmem:[%s218 + $0x190] sm:$0xff] %v1623
        %1688 = vst [vmem:[%s218 + $0x198] sm:$0xff] %v1624
        %1689 = vst [vmem:[%s218 + $0x1a0] sm:$0xff] %v1625
        %1690 = vst [vmem:[%s218 + $0x1a8] sm:$0xff] %v1626
        %1691 = vst [vmem:[%s218 + $0x1b0] sm:$0xff] %v1627
        %1692 = vst [vmem:[%s218 + $0x1b8] sm:$0xff] %v1628
        %1693 = vst [vmem:[%s218 + $0x1c0] sm:$0xff] %v1629
        %1694 = vst [vmem:[%s218 + $0x1c8] sm:$0xff] %v1630
        %1695 = vst [vmem:[%s218 + $0x1d0] sm:$0xff] %v1631
        %1696 = vst [vmem:[%s218 + $0x1d8] sm:$0xff] %v1632
        %1697 = vst [vmem:[%s218 + $0x1e0] sm:$0xff] %v1633
        %1698 = vst [vmem:[%s218 + $0x1e8] sm:$0xff] %v1634
        %1699 = vst [vmem:[%s218 + $0x1f0] sm:$0xff] %v1635
        %1700 = vst [vmem:[%s218 + $0x1f8] sm:$0xff] %v1636
        %s1701 = sand.u32 %s137, 1
        %s1702 = scalar_lea.sflag [#allocation3], %s1701
        %s1703 = sand.u32 %s137, 1
        %s1704 = smul.addr %s1703, 512
        %s1705 = scalar_lea.vmem [#allocation2], %s1704
        // Predicated region
        $region41: #{tpu_custom_call.1} parent=39 // pred_check
          %p1706 = pneg %p147
        $region42: #{tpu_custom_call.1} parent=39 // pred_check_branch
          %1708 = sbr.rel (%p1706) target = $region44
        $region43: #{tpu_custom_call.1} parent=39 // pred_region
          %s1709 = smul.u32 32, %s19
          %1711 = vsyncadd %s1702, 0
          %s1712 = smul.addr %s1709, 2
          %s1713 = smul.addr %s1712, 8
          %s1714 = scalar_lea.hbm %s5, %s1713
          %s1715 = sshll.u32 %s1705, 4
          %s1716 = int_to_ptr.vmem [resolvable:$true] %s1715
          %s1717 = sshll.u32 %s1714, 4
          %s1718 = int_to_ptr.hbm [resolvable:$true] %s1717
          %1723 = dma.vmem_to_hbm [thread:$0]  %s1716, 8192, %s1718, %s1702, 256, 256, 16
        $region44: #{tpu_custom_call.1} parent=39 // pred_fallthru
          _
      $region40: #{tpu_custom_call.1} parent=5 // pred_fallthru
        _
      %p1724 = scmp.le.s32.totalorder 2, %s14
      // Predicated region
      $region45: #{tpu_custom_call.1} parent=5 // pred_check
        %p1725 = pneg %p1724
      $region46: #{tpu_custom_call.1} parent=5 // pred_check_branch
        %1727 = sbr.rel (%p1725) target = $region48
      $region47: #{tpu_custom_call.1} parent=5 // pred_region
        %s1728 = ssub.s32 %s14, 2
        // Predicated region
        $region49: #{tpu_custom_call.1} parent=47 // pred_check
          %p1729 = pneg %p153
        $region50: #{tpu_custom_call.1} parent=47 // pred_check_branch
          %1731 = sbr.rel (%p1729) target = $region52
        $region51: #{tpu_custom_call.1} parent=47 // pred_region
          %s1732 = sand.u32 %s138, 1
          %s1733 = scalar_lea.sflag [#allocation3], %s1732
          %s1734 = sand.u32 %s138, 1
          %s1735 = smul.addr %s1734, 512
          %s1736 = scalar_lea.vmem [#allocation2], %s1735
          %1738 = dma.done %s1733, 8192
        $region52: #{tpu_custom_call.1} parent=47 // pred_fallthru
          _
      $region48: #{tpu_custom_call.1} parent=5 // pred_fallthru
        _
    $region6: #{tpu_custom_call.1} parent=1 // loop_footer
      %s18 = sadd.s32 1, %s14
    $region7: #{tpu_custom_call.1} parent=1 // loop_footer_branch
      %13 = sbr.rel target = $region3
    $region8: #{tpu_custom_call.1} parent=1 // loop_exit
      _
    %1739 = vsyncpa [#allocation3], 1
    %s1740 = scalar_lea.sflag [#allocation3], 1
    %1741 = vsyncpa %s1740, 1

</llo_original>
